<compile_context>
chip_gen: v7x
topology: tpu7x:2x2x1
jax: 0.10.0
libtpu: 0.0.40
codegen_flags: <defaults>
</compile_context>

<pallas_src>
import jax
import jax.numpy as jnp
from jax.experimental import pallas as pl
from jax.experimental.pallas import tpu as pltpu
import numpy as np

# ----------------------------- config (synthetic) ---------------------------
N = 128          # batch_size  (config['train']['batch_size']); 2N=256 rows/MXU pass
C, H, W = 4, 16, 16
F = C * H * W    # flattened backbone input dim
D = 32           # architecture['dim'] == num_features (final_output_dim)

SIM_COEFF = 25.0
STD_COEFF = 25.0
COV_COEFF = 1.0


# ----------------------- fused projector + VICReg loss -----------------------
def _vicreg_fused_kernel(xy_ref, w_ref, o_ref):
    # xy_ref: [2N, F]  (view x stacked on top of view y, pre-stacked outside)
    # w_ref : [F, D]   projector weight (bias dropped: it cancels in the loss)
    # o_ref : [1, 1]   SMEM scalar output
    n2 = xy_ref.shape[0]
    n = n2 // 2
    d = w_ref.shape[1]

    # --- single projection for both views: one [2N, F] @ [F, D] MXU pass ---
    emb = jnp.dot(xy_ref[...], w_ref[...],
                  preferred_element_type=jnp.float32)             # [2N, D]
    x = emb[:n, :]          # static, sublane-aligned slices (n % 8 == 0)
    y = emb[n:, :]

    # --- repr loss: F.mse_loss(x, y) (mean over all elements) ---
    diff = x - y
    repr_loss = jnp.sum(diff * diff) * (1.0 / (n * d))

    # --- per-view batch centering ---
    xc = x - jnp.mean(x, axis=0, keepdims=True)
    yc = y - jnp.mean(y, axis=0, keepdims=True)

    # --- fused covariance: ONE MXU pass for both views ---
    # zc = [xc | yc] : [N, 2D]; gram(zc) has (n-1)*cov_x in its top-left D x D
    # block and (n-1)*cov_y in its bottom-right block.
    inv_nm1 = 1.0 / (n - 1)
    zc = jnp.concatenate([xc, yc], axis=1)                        # [N, 2D]
    dn = (((0,), (0,)), ((), ()))                                 # contract axis 0
    cov = jax.lax.dot_general(zc, zc, dn,
                              preferred_element_type=jnp.float32) * inv_nm1  # [2D, 2D]

    rows = jax.lax.broadcasted_iota(jnp.int32, (2 * d, 2 * d), 0)
    cols = jax.lax.broadcasted_iota(jnp.int32, (2 * d, 2 * d), 1)
    diag_mask = rows == cols
    same_block = (rows < d) == (cols < d)     # inside cov_x or inside cov_y

    # --- std loss: torch.var(dim=0) is unbiased == diag(cov) (read from the
    # MXU result itself so the off-diagonal identity below is self-consistent)
    diag_cov = jnp.where(diag_mask, cov, 0.0)
    var_all = jnp.sum(diag_cov, axis=0, keepdims=True)            # [1, 2D] = var_x | var_y
    std_all = jnp.sqrt(var_all + 1e-4)
    # mean(relu(1-std_x))/2 + mean(relu(1-std_y))/2 == mean over the 2D vector
    std_loss = jnp.mean(jnp.maximum(1.0 - std_all, 0.0))

    # --- covariance loss: sum(offdiag^2) = sum(diag-block^2) - sum(diag^2) ---
    blocks_sq = jnp.sum(jnp.where(same_block, cov, 0.0) ** 2)
    diag_sq = jnp.sum(diag_cov * diag_cov)
    cov_loss = (blocks_sq - diag_sq) * (1.0 / d)

    o_ref[0, 0] = (SIM_COEFF * repr_loss
                   + STD_COEFF * std_loss
                   + COV_COEFF * cov_loss)


def vicreg_forward(x_img, y_img, w):
    n = x_img.shape[0]
    f, d = w.shape
    x_flat = x_img.reshape(n, -1).astype(jnp.float32)
    y_flat = y_img.reshape(n, -1).astype(jnp.float32)
    # Stack the two views OUTSIDE the kernel: one [2N, F] input, one DMA setup.
    xy = jnp.concatenate([x_flat, y_flat], axis=0)

    cost = pl.CostEstimate(
        flops=2 * (2 * n) * f * d + 2 * n * (2 * d) * (2 * d),
        transcendentals=2 * d,
        bytes_accessed=4 * (2 * n * f + f * d + 1),
    )
    out = pl.pallas_call(
        _vicreg_fused_kernel,
        out_shape=jax.ShapeDtypeStruct((1, 1), jnp.float32),
        in_specs=[
            pl.BlockSpec(memory_space=pltpu.MemorySpace.VMEM),
            pl.BlockSpec(memory_space=pltpu.MemorySpace.VMEM),
        ],
        out_specs=pl.BlockSpec(memory_space=pltpu.MemorySpace.SMEM),
        cost_estimate=cost,
    )(xy, w)
    return out[0, 0]


# ------------------------------ JAX reference --------------------------------
def _off_diagonal_sq_sum(cov):
    d = cov.shape[0]
    mask = 1.0 - jnp.eye(d, dtype=cov.dtype)
    return jnp.sum((cov * mask) ** 2)


def vicreg_forward_ref(x_img, y_img, w):
    n = x_img.shape[0]
    d = w.shape[1]
    x = x_img.reshape(n, -1).astype(jnp.float32) @ w
    y = y_img.reshape(n, -1).astype(jnp.float32) @ w
    repr_loss = jnp.mean((x - y) ** 2)
    x = x - x.mean(axis=0)
    y = y - y.mean(axis=0)
    std_x = jnp.sqrt(x.var(axis=0, ddof=1) + 1e-4)
    std_y = jnp.sqrt(y.var(axis=0, ddof=1) + 1e-4)
    std_loss = (jnp.mean(jax.nn.relu(1 - std_x)) / 2
                + jnp.mean(jax.nn.relu(1 - std_y)) / 2)
    cov_x = x.T @ x / (n - 1)
    cov_y = y.T @ y / (n - 1)
    cov_loss = _off_diagonal_sq_sum(cov_x) / d + _off_diagonal_sq_sum(cov_y) / d
    return SIM_COEFF * repr_loss + STD_COEFF * std_loss + COV_COEFF * cov_loss


# ----------------------------------- main ------------------------------------
if __name__ == "__main__":
    key = jax.random.PRNGKey(0)
    k1, k2, k3 = jax.random.split(key, 3)

    # two augmented "views" x, y in NCHW
    x_img = jax.random.normal(k1, (N, C, H, W), dtype=jnp.float32)
    y_img = jax.random.normal(k2, (N, C, H, W), dtype=jnp.float32)

    # deterministic synthetic parameter for the backbone+projector stand-in
    w = jax.random.normal(k3, (F, D), dtype=jnp.float32) * (1.0 / np.sqrt(F))

    loss = jax.block_until_ready(vicreg_forward(x_img, y_img, w))
    loss_ref = jax.block_until_ready(vicreg_forward_ref(x_img, y_img, w))

    np.testing.assert_allclose(np.asarray(loss), np.asarray(loss_ref),
                               rtol=1e-4, atol=1e-4)
    print("KERNEL_OK")
</pallas_src>

<mosaic_0001>
module attributes {stable_mosaic.version = 11 : i64} {
  func.func @_vicreg_fused_kernel(%arg0: memref<256x1024xf32, #tpu.memory_space<vmem>>, %arg1: memref<1024x32xf32, #tpu.memory_space<vmem>>, %arg2: memref<1x1xf32, #tpu.memory_space<smem>>) attributes {dimension_semantics = [], scalar_prefetch = 0 : i64, scratch_operands = 0 : i64, tpu.core_type = #tpu.core_type<tc>} {
    %c0 = arith.constant 0 : index
    %c0_0 = arith.constant 0 : index
    %0 = vector.load %arg0[%c0, %c0_0] : memref<256x1024xf32, #tpu.memory_space<vmem>>, vector<256x1024xf32>
    %c0_1 = arith.constant 0 : index
    %c0_2 = arith.constant 0 : index
    %1 = vector.load %arg1[%c0_1, %c0_2] : memref<1024x32xf32, #tpu.memory_space<vmem>>, vector<1024x32xf32>
    %cst = arith.constant dense<0.000000e+00> : vector<256x32xf32>
    %2 = tpu.matmul %0, %1, %cst {dimension_numbers = #tpu.dot_dimension_numbers<[1], [0], [0], [1], [0, 0, 1, 1], [], []>} : vector<256x1024xf32>, vector<1024x32xf32>, vector<256x32xf32> -> vector<256x32xf32>
    %3 = vector.extract_strided_slice %2 {offsets = [0, 0], sizes = [128, 32], strides = [1, 1]} : vector<256x32xf32> to vector<128x32xf32>
    %4 = vector.extract_strided_slice %2 {offsets = [128, 0], sizes = [128, 32], strides = [1, 1]} : vector<256x32xf32> to vector<128x32xf32>
    %5 = arith.subf %3, %4 : vector<128x32xf32>
    %6 = arith.mulf %5, %5 : vector<128x32xf32>
    %7 = vector.shape_cast %6 : vector<128x32xf32> to vector<1x128x32xf32>
    %cst_3 = arith.constant dense<0.000000e+00> : vector<1xf32>
    %8 = vector.multi_reduction <add>, %7, %cst_3 [1, 2] : vector<1x128x32xf32> to vector<1xf32>
    %9 = vector.shape_cast %8 : vector<1xf32> to vector<1x1x1xf32>
    %10 = vector.extract %9[0, 0, 0] : f32 from vector<1x1x1xf32>
    %cst_4 = arith.constant 2.44140625E-4 : f32
    %11 = arith.mulf %10, %cst_4 : f32
    %cst_5 = arith.constant dense<0.000000e+00> : vector<32xf32>
    %12 = vector.multi_reduction <add>, %3, %cst_5 [0] : vector<128x32xf32> to vector<32xf32>
    %13 = vector.shape_cast %12 : vector<32xf32> to vector<1x32xf32>
    %cst_6 = arith.constant 1.280000e+02 : f32
    %14 = vector.broadcast %cst_6 : f32 to vector<1x32xf32>
    %15 = arith.divf %13, %14 : vector<1x32xf32>
    %16 = vector.broadcast %15 : vector<1x32xf32> to vector<128x32xf32>
    %17 = arith.subf %3, %16 : vector<128x32xf32>
    %cst_7 = arith.constant dense<0.000000e+00> : vector<32xf32>
    %18 = vector.multi_reduction <add>, %4, %cst_7 [0] : vector<128x32xf32> to vector<32xf32>
    %19 = vector.shape_cast %18 : vector<32xf32> to vector<1x32xf32>
    %cst_8 = arith.constant 1.280000e+02 : f32
    %20 = vector.broadcast %cst_8 : f32 to vector<1x32xf32>
    %21 = arith.divf %19, %20 : vector<1x32xf32>
    %22 = vector.broadcast %21 : vector<1x32xf32> to vector<128x32xf32>
    %23 = arith.subf %4, %22 : vector<128x32xf32>
    %24 = tpu.concatenate %17, %23 in 1 : vector<128x32xf32>, vector<128x32xf32> -> vector<128x64xf32>
    %cst_9 = arith.constant dense<0.000000e+00> : vector<64x64xf32>
    %25 = tpu.matmul %24, %24, %cst_9 {dimension_numbers = #tpu.dot_dimension_numbers<[0], [0], [1], [1], [0, 1, 1, 1], [], []>} : vector<128x64xf32>, vector<128x64xf32>, vector<64x64xf32> -> vector<64x64xf32>
    %cst_10 = arith.constant 0.00787401571 : f32
    %26 = vector.broadcast %cst_10 : f32 to vector<64x64xf32>
    %27 = arith.mulf %25, %26 : vector<64x64xf32>
    %28 = tpu.iota {dimensions = array<i32: 0>} : vector<64x64xi32>
    %29 = tpu.iota {dimensions = array<i32: 1>} : vector<64x64xi32>
    %30 = arith.cmpi eq, %28, %29 : vector<64x64xi32>
    %c32_i32 = arith.constant 32 : i32
    %31 = vector.broadcast %c32_i32 : i32 to vector<64x64xi32>
    %32 = arith.cmpi slt, %28, %31 : vector<64x64xi32>
    %c32_i32_11 = arith.constant 32 : i32
    %33 = vector.broadcast %c32_i32_11 : i32 to vector<64x64xi32>
    %34 = arith.cmpi slt, %29, %33 : vector<64x64xi32>
    %35 = arith.xori %32, %34 : vector<64x64xi1>
    %cst_12 = arith.constant dense<true> : vector<64x64xi1>
    %36 = arith.xori %35, %cst_12 : vector<64x64xi1>
    %cst_13 = arith.constant 0.000000e+00 : f32
    %37 = vector.broadcast %cst_13 : f32 to vector<64x64xf32>
    %38 = arith.select %30, %27, %37 : vector<64x64xi1>, vector<64x64xf32>
    %cst_14 = arith.constant dense<0.000000e+00> : vector<64xf32>
    %39 = vector.multi_reduction <add>, %38, %cst_14 [0] : vector<64x64xf32> to vector<64xf32>
    %40 = vector.shape_cast %39 : vector<64xf32> to vector<1x64xf32>
    %cst_15 = arith.constant 9.99999974E-5 : f32
    %41 = vector.broadcast %cst_15 : f32 to vector<1x64xf32>
    %42 = arith.addf %40, %41 : vector<1x64xf32>
    %43 = math.sqrt %42 : vector<1x64xf32>
    %cst_16 = arith.constant 1.000000e+00 : f32
    %44 = vector.broadcast %cst_16 : f32 to vector<1x64xf32>
    %45 = arith.subf %44, %43 : vector<1x64xf32>
    %cst_17 = arith.constant 0.000000e+00 : f32
    %46 = vector.broadcast %cst_17 : f32 to vector<1x64xf32>
    %47 = arith.maximumf %45, %46 : vector<1x64xf32>
    %48 = vector.shape_cast %47 : vector<1x64xf32> to vector<1x1x64xf32>
    %cst_18 = arith.constant dense<0.000000e+00> : vector<1xf32>
    %49 = vector.multi_reduction <add>, %48, %cst_18 [1, 2] : vector<1x1x64xf32> to vector<1xf32>
    %50 = vector.shape_cast %49 : vector<1xf32> to vector<1x1x1xf32>
    %51 = vector.extract %50[0, 0, 0] : f32 from vector<1x1x1xf32>
    %cst_19 = arith.constant 6.400000e+01 : f32
    %52 = arith.divf %51, %cst_19 : f32
    %cst_20 = arith.constant 0.000000e+00 : f32
    %53 = vector.broadcast %cst_20 : f32 to vector<64x64xf32>
    %54 = arith.select %36, %27, %53 : vector<64x64xi1>, vector<64x64xf32>
    %55 = arith.mulf %54, %54 : vector<64x64xf32>
    %56 = vector.shape_cast %55 : vector<64x64xf32> to vector<1x64x64xf32>
    %cst_21 = arith.constant dense<0.000000e+00> : vector<1xf32>
    %57 = vector.multi_reduction <add>, %56, %cst_21 [1, 2] : vector<1x64x64xf32> to vector<1xf32>
    %58 = vector.shape_cast %57 : vector<1xf32> to vector<1x1x1xf32>
    %59 = vector.extract %58[0, 0, 0] : f32 from vector<1x1x1xf32>
    %60 = arith.mulf %38, %38 : vector<64x64xf32>
    %61 = vector.shape_cast %60 : vector<64x64xf32> to vector<1x64x64xf32>
    %cst_22 = arith.constant dense<0.000000e+00> : vector<1xf32>
    %62 = vector.multi_reduction <add>, %61, %cst_22 [1, 2] : vector<1x64x64xf32> to vector<1xf32>
    %63 = vector.shape_cast %62 : vector<1xf32> to vector<1x1x1xf32>
    %64 = vector.extract %63[0, 0, 0] : f32 from vector<1x1x1xf32>
    %65 = arith.subf %59, %64 : f32
    %cst_23 = arith.constant 3.125000e-02 : f32
    %66 = arith.mulf %65, %cst_23 : f32
    %cst_24 = arith.constant 2.500000e+01 : f32
    %67 = arith.mulf %cst_24, %11 : f32
    %cst_25 = arith.constant 2.500000e+01 : f32
    %68 = arith.mulf %cst_25, %52 : f32
    %69 = arith.addf %67, %68 : f32
    %cst_26 = arith.constant 1.000000e+00 : f32
    %70 = arith.mulf %cst_26, %66 : f32
    %71 = arith.addf %69, %70 : f32
    %c0_27 = arith.constant 0 : index
    %c0_28 = arith.constant 0 : index
    %72 = memref.load %arg2[%c0_27, %c0_28] : memref<1x1xf32, #tpu.memory_space<smem>>
    memref.store %71, %arg2[%c0_27, %c0_28] : memref<1x1xf32, #tpu.memory_space<smem>>
    return
  }
}

</mosaic_0001>

<llo_original>
// kernel: tpu_custom_call.1
$region0: #{tpu_custom_call.1}
  #allocation0 [shape = 'u32[]', space=smem, size = 0x4, offset = 0x4, fixed_abs, tag = 'smem constant byte address 0x4 - core index']
  #allocation1 [shape = 'u32[144,128]{1,0:T(1,128)}', space=vmem, size = 0x12000, scoped, tag = 'internal scratch']
  %s0 = inlined_call_operand.hbm [shape: f32[256,1024], index: 0, kind: input, shape index: {}]
  %s1 = inlined_call_operand.vmem [shape: f32[1024,32], index: 1, kind: input, shape index: {}]
  %s2 = inlined_call_operand.hbm [shape: f32[1,1], index: 2, kind: output, shape index: {}]
  %s3 = sld [smem:[#allocation0]]
  $region22: #{tpu_custom_call.1} parent=0
    _
  %s5 = ssub.s32 1, %s3
  %s6 = scalar_select 0, %s5, %s3
  $region1: #{tpu_custom_call.1} parent=0
    #allocation2 [shape = 'u8[1048576]{0}', space=vmem, size = 0x100000, scoped, tag = 'input window, operand 0, single buffered']
    #allocation3 [shape = 's32[1]{0}', space=sflag, size = 0x4, scoped, tag = 'scoped memory for tpu_custom_call.1']
    #allocation4 [shape = 's32[1]{0}', space=sflag, size = 0x4, scoped, tag = 'scoped memory for tpu_custom_call.1']
    #allocation5 [shape = 'u8[512]{0}', space=smem, size = 0x200, scoped, tag = 'output window, operand 0, single buffered']
    %7 = vsyncpa [#allocation3], 0
    %8 = vsyncpa [#allocation4], 0
    // Predicated region
    $region2: #{tpu_custom_call.1} parent=1 // pred_check
      _
    $region3: #{tpu_custom_call.1} parent=1 // pred_check_branch
      %10 = sbr.rel (0) target = $region5
    $region4: #{tpu_custom_call.1} parent=1 // pred_region
      %s12 = ssub.s32 32768, 32768
      %13 = vsyncadd [#allocation3], %s12
      %s14 = sshll.u32 [#allocation2], 4
      %s15 = int_to_ptr.vmem [resolvable:$true] %s14
      %20 = dma.hbm_to_vmem [thread:$0]  %s0, 32768, %s15, [#allocation3], 1024, 1024, 64
    $region5: #{tpu_custom_call.1} parent=1 // pred_fallthru
      _
    // Predicated region
    $region6: #{tpu_custom_call.1} parent=1 // pred_check
      _
    $region7: #{tpu_custom_call.1} parent=1 // pred_check_branch
      %22 = sbr.rel (0) target = $region9
    $region8: #{tpu_custom_call.1} parent=1 // pred_region
      _
    $region9: #{tpu_custom_call.1} parent=1 // pred_fallthru
      _
    // Predicated region
    $region10: #{tpu_custom_call.1} parent=1 // pred_check
      _
    $region11: #{tpu_custom_call.1} parent=1 // pred_check_branch
      %24 = sbr.rel (0) target = $region13
    $region12: #{tpu_custom_call.1} parent=1 // pred_region
      %25 = dma.done [#allocation3], 32768
    $region13: #{tpu_custom_call.1} parent=1 // pred_fallthru
      _
    %v26 = vld [vmem:[#allocation2] sm:$0xff]
    %v27 = vld [vmem:[#allocation2 + $0x8] sm:$0xff]
    %v28 = vld [vmem:[#allocation2 + $0x10] sm:$0xff]
    %v29 = vld [vmem:[#allocation2 + $0x18] sm:$0xff]
    %v30 = vld [vmem:[#allocation2 + $0x20] sm:$0xff]
    %v31 = vld [vmem:[#allocation2 + $0x28] sm:$0xff]
    %v32 = vld [vmem:[#allocation2 + $0x30] sm:$0xff]
    %v33 = vld [vmem:[#allocation2 + $0x38] sm:$0xff]
    %v34 = vld [vmem:[#allocation2 + $0x40] sm:$0xff]
    %v35 = vld [vmem:[#allocation2 + $0x48] sm:$0xff]
    %v36 = vld [vmem:[#allocation2 + $0x50] sm:$0xff]
    %v37 = vld [vmem:[#allocation2 + $0x58] sm:$0xff]
    %v38 = vld [vmem:[#allocation2 + $0x60] sm:$0xff]
    %v39 = vld [vmem:[#allocation2 + $0x68] sm:$0xff]
    %v40 = vld [vmem:[#allocation2 + $0x70] sm:$0xff]
    %v41 = vld [vmem:[#allocation2 + $0x78] sm:$0xff]
    %v42 = vld [vmem:[#allocation2 + $0x80] sm:$0xff]
    %v43 = vld [vmem:[#allocation2 + $0x88] sm:$0xff]
    %v44 = vld [vmem:[#allocation2 + $0x90] sm:$0xff]
    %v45 = vld [vmem:[#allocation2 + $0x98] sm:$0xff]
    %v46 = vld [vmem:[#allocation2 + $0xa0] sm:$0xff]
    %v47 = vld [vmem:[#allocation2 + $0xa8] sm:$0xff]
    %v48 = vld [vmem:[#allocation2 + $0xb0] sm:$0xff]
    %v49 = vld [vmem:[#allocation2 + $0xb8] sm:$0xff]
    %v50 = vld [vmem:[#allocation2 + $0xc0] sm:$0xff]
    %v51 = vld [vmem:[#allocation2 + $0xc8] sm:$0xff]
    %v52 = vld [vmem:[#allocation2 + $0xd0] sm:$0xff]
    %v53 = vld [vmem:[#allocation2 + $0xd8] sm:$0xff]
    %v54 = vld [vmem:[#allocation2 + $0xe0] sm:$0xff]
    %v55 = vld [vmem:[#allocation2 + $0xe8] sm:$0xff]
    %v56 = vld [vmem:[#allocation2 + $0xf0] sm:$0xff]
    %v57 = vld [vmem:[#allocation2 + $0xf8] sm:$0xff]
    %v58 = vld [vmem:[#allocation2 + $0x100] sm:$0xff]
    %v59 = vld [vmem:[#allocation2 + $0x108] sm:$0xff]
    %v60 = vld [vmem:[#allocation2 + $0x110] sm:$0xff]
    %v61 = vld [vmem:[#allocation2 + $0x118] sm:$0xff]
    %v62 = vld [vmem:[#allocation2 + $0x120] sm:$0xff]
    %v63 = vld [vmem:[#allocation2 + $0x128] sm:$0xff]
    %v64 = vld [vmem:[#allocation2 + $0x130] sm:$0xff]
    %v65 = vld [vmem:[#allocation2 + $0x138] sm:$0xff]
    %v66 = vld [vmem:[#allocation2 + $0x140] sm:$0xff]
    %v67 = vld [vmem:[#allocation2 + $0x148] sm:$0xff]
    %v68 = vld [vmem:[#allocation2 + $0x150] sm:$0xff]
    %v69 = vld [vmem:[#allocation2 + $0x158] sm:$0xff]
    %v70 = vld [vmem:[#allocation2 + $0x160] sm:$0xff]
    %v71 = vld [vmem:[#allocation2 + $0x168] sm:$0xff]
    %v72 = vld [vmem:[#allocation2 + $0x170] sm:$0xff]
    %v73 = vld [vmem:[#allocation2 + $0x178] sm:$0xff]
    %v74 = vld [vmem:[#allocation2 + $0x180] sm:$0xff]
    %v75 = vld [vmem:[#allocation2 + $0x188] sm:$0xff]
    %v76 = vld [vmem:[#allocation2 + $0x190] sm:$0xff]
    %v77 = vld [vmem:[#allocation2 + $0x198] sm:$0xff]
    %v78 = vld [vmem:[#allocation2 + $0x1a0] sm:$0xff]
    %v79 = vld [vmem:[#allocation2 + $0x1a8] sm:$0xff]
    %v80 = vld [vmem:[#allocation2 + $0x1b0] sm:$0xff]
    %v81 = vld [vmem:[#allocation2 + $0x1b8] sm:$0xff]
    %v82 = vld [vmem:[#allocation2 + $0x1c0] sm:$0xff]
    %v83 = vld [vmem:[#allocation2 + $0x1c8] sm:$0xff]
    %v84 = vld [vmem:[#allocation2 + $0x1d0] sm:$0xff]
    %v85 = vld [vmem:[#allocation2 + $0x1d8] sm:$0xff]
    %v86 = vld [vmem:[#allocation2 + $0x1e0] sm:$0xff]
    %v87 = vld [vmem:[#allocation2 + $0x1e8] sm:$0xff]
    %v88 = vld [vmem:[#allocation2 + $0x1f0] sm:$0xff]
    %v89 = vld [vmem:[#allocation2 + $0x1f8] sm:$0xff]
    %v90 = vld [vmem:[#allocation2 + $0x200] sm:$0xff]
    %v91 = vld [vmem:[#allocation2 + $0x208] sm:$0xff]
    %v92 = vld [vmem:[#allocation2 + $0x210] sm:$0xff]
    %v93 = vld [vmem:[#allocation2 + $0x218] sm:$0xff]
    %v94 = vld [vmem:[#allocation2 + $0x220] sm:$0xff]
    %v95 = vld [vmem:[#allocation2 + $0x228] sm:$0xff]
    %v96 = vld [vmem:[#allocation2 + $0x230] sm:$0xff]
    %v97 = vld [vmem:[#allocation2 + $0x238] sm:$0xff]
    %v98 = vld [vmem:[#allocation2 + $0x240] sm:$0xff]
    %v99 = vld [vmem:[#allocation2 + $0x248] sm:$0xff]
    %v100 = vld [vmem:[#allocation2 + $0x250] sm:$0xff]
    %v101 = vld [vmem:[#allocation2 + $0x258] sm:$0xff]
    %v102 = vld [vmem:[#allocation2 + $0x260] sm:$0xff]
    %v103 = vld [vmem:[#allocation2 + $0x268] sm:$0xff]
    %v104 = vld [vmem:[#allocation2 + $0x270] sm:$0xff]
    %v105 = vld [vmem:[#allocation2 + $0x278] sm:$0xff]
    %v106 = vld [vmem:[#allocation2 + $0x280] sm:$0xff]
    %v107 = vld [vmem:[#allocation2 + $0x288] sm:$0xff]
    %v108 = vld [vmem:[#allocation2 + $0x290] sm:$0xff]
    %v109 = vld [vmem:[#allocation2 + $0x298] sm:$0xff]
    %v110 = vld [vmem:[#allocation2 + $0x2a0] sm:$0xff]
    %v111 = vld [vmem:[#allocation2 + $0x2a8] sm:$0xff]
    %v112 = vld [vmem:[#allocation2 + $0x2b0] sm:$0xff]
    %v113 = vld [vmem:[#allocation2 + $0x2b8] sm:$0xff]
    %v114 = vld [vmem:[#allocation2 + $0x2c0] sm:$0xff]
    %v115 = vld [vmem:[#allocation2 + $0x2c8] sm:$0xff]
    %v116 = vld [vmem:[#allocation2 + $0x2d0] sm:$0xff]
    %v117 = vld [vmem:[#allocation2 + $0x2d8] sm:$0xff]
    %v118 = vld [vmem:[#allocation2 + $0x2e0] sm:$0xff]
    %v119 = vld [vmem:[#allocation2 + $0x2e8] sm:$0xff]
    %v120 = vld [vmem:[#allocation2 + $0x2f0] sm:$0xff]
    %v121 = vld [vmem:[#allocation2 + $0x2f8] sm:$0xff]
    %v122 = vld [vmem:[#allocation2 + $0x300] sm:$0xff]
    %v123 = vld [vmem:[#allocation2 + $0x308] sm:$0xff]
    %v124 = vld [vmem:[#allocation2 + $0x310] sm:$0xff]
    %v125 = vld [vmem:[#allocation2 + $0x318] sm:$0xff]
    %v126 = vld [vmem:[#allocation2 + $0x320] sm:$0xff]
    %v127 = vld [vmem:[#allocation2 + $0x328] sm:$0xff]
    %v128 = vld [vmem:[#allocation2 + $0x330] sm:$0xff]
    %v129 = vld [vmem:[#allocation2 + $0x338] sm:$0xff]
    %v130 = vld [vmem:[#allocation2 + $0x340] sm:$0xff]
    %v131 = vld [vmem:[#allocation2 + $0x348] sm:$0xff]
    %v132 = vld [vmem:[#allocation2 + $0x350] sm:$0xff]
    %v133 = vld [vmem:[#allocation2 + $0x358] sm:$0xff]
    %v134 = vld [vmem:[#allocation2 + $0x360] sm:$0xff]
    %v135 = vld [vmem:[#allocation2 + $0x368] sm:$0xff]
    %v136 = vld [vmem:[#allocation2 + $0x370] sm:$0xff]
    %v137 = vld [vmem:[#allocation2 + $0x378] sm:$0xff]
    %v138 = vld [vmem:[#allocation2 + $0x380] sm:$0xff]
    %v139 = vld [vmem:[#allocation2 + $0x388] sm:$0xff]
    %v140 = vld [vmem:[#allocation2 + $0x390] sm:$0xff]
    %v141 = vld [vmem:[#allocation2 + $0x398] sm:$0xff]
    %v142 = vld [vmem:[#allocation2 + $0x3a0] sm:$0xff]
    %v143 = vld [vmem:[#allocation2 + $0x3a8] sm:$0xff]
    %v144 = vld [vmem:[#allocation2 + $0x3b0] sm:$0xff]
    %v145 = vld [vmem:[#allocation2 + $0x3b8] sm:$0xff]
    %v146 = vld [vmem:[#allocation2 + $0x3c0] sm:$0xff]
    %v147 = vld [vmem:[#allocation2 + $0x3c8] sm:$0xff]
    %v148 = vld [vmem:[#allocation2 + $0x3d0] sm:$0xff]
    %v149 = vld [vmem:[#allocation2 + $0x3d8] sm:$0xff]
    %v150 = vld [vmem:[#allocation2 + $0x3e0] sm:$0xff]
    %v151 = vld [vmem:[#allocation2 + $0x3e8] sm:$0xff]
    %v152 = vld [vmem:[#allocation2 + $0x3f0] sm:$0xff]
    %v153 = vld [vmem:[#allocation2 + $0x3f8] sm:$0xff]
    %v154 = vld [vmem:[#allocation2 + $0x400] sm:$0xff]
    %v155 = vld [vmem:[#allocation2 + $0x408] sm:$0xff]
    %v156 = vld [vmem:[#allocation2 + $0x410] sm:$0xff]
    %v157 = vld [vmem:[#allocation2 + $0x418] sm:$0xff]
    %v158 = vld [vmem:[#allocation2 + $0x420] sm:$0xff]
    %v159 = vld [vmem:[#allocation2 + $0x428] sm:$0xff]
    %v160 = vld [vmem:[#allocation2 + $0x430] sm:$0xff]
    %v161 = vld [vmem:[#allocation2 + $0x438] sm:$0xff]
    %v162 = vld [vmem:[#allocation2 + $0x440] sm:$0xff]
    %v163 = vld [vmem:[#allocation2 + $0x448] sm:$0xff]
    %v164 = vld [vmem:[#allocation2 + $0x450] sm:$0xff]
    %v165 = vld [vmem:[#allocation2 + $0x458] sm:$0xff]
    %v166 = vld [vmem:[#allocation2 + $0x460] sm:$0xff]
    %v167 = vld [vmem:[#allocation2 + $0x468] sm:$0xff]
    %v168 = vld [vmem:[#allocation2 + $0x470] sm:$0xff]
    %v169 = vld [vmem:[#allocation2 + $0x478] sm:$0xff]
    %v170 = vld [vmem:[#allocation2 + $0x480] sm:$0xff]
    %v171 = vld [vmem:[#allocation2 + $0x488] sm:$0xff]
    %v172 = vld [vmem:[#allocation2 + $0x490] sm:$0xff]
    %v173 = vld [vmem:[#allocation2 + $0x498] sm:$0xff]
    %v174 = vld [vmem:[#allocation2 + $0x4a0] sm:$0xff]
    %v175 = vld [vmem:[#allocation2 + $0x4a8] sm:$0xff]
    %v176 = vld [vmem:[#allocation2 + $0x4b0] sm:$0xff]
    %v177 = vld [vmem:[#allocation2 + $0x4b8] sm:$0xff]
    %v178 = vld [vmem:[#allocation2 + $0x4c0] sm:$0xff]
    %v179 = vld [vmem:[#allocation2 + $0x4c8] sm:$0xff]
    %v180 = vld [vmem:[#allocation2 + $0x4d0] sm:$0xff]
    %v181 = vld [vmem:[#allocation2 + $0x4d8] sm:$0xff]
    %v182 = vld [vmem:[#allocation2 + $0x4e0] sm:$0xff]
    %v183 = vld [vmem:[#allocation2 + $0x4e8] sm:$0xff]
    %v184 = vld [vmem:[#allocation2 + $0x4f0] sm:$0xff]
    %v185 = vld [vmem:[#allocation2 + $0x4f8] sm:$0xff]
    %v186 = vld [vmem:[#allocation2 + $0x500] sm:$0xff]
    %v187 = vld [vmem:[#allocation2 + $0x508] sm:$0xff]
    %v188 = vld [vmem:[#allocation2 + $0x510] sm:$0xff]
    %v189 = vld [vmem:[#allocation2 + $0x518] sm:$0xff]
    %v190 = vld [vmem:[#allocation2 + $0x520] sm:$0xff]
    %v191 = vld [vmem:[#allocation2 + $0x528] sm:$0xff]
    %v192 = vld [vmem:[#allocation2 + $0x530] sm:$0xff]
    %v193 = vld [vmem:[#allocation2 + $0x538] sm:$0xff]
    %v194 = vld [vmem:[#allocation2 + $0x540] sm:$0xff]
    %v195 = vld [vmem:[#allocation2 + $0x548] sm:$0xff]
    %v196 = vld [vmem:[#allocation2 + $0x550] sm:$0xff]
    %v197 = vld [vmem:[#allocation2 + $0x558] sm:$0xff]
    %v198 = vld [vmem:[#allocation2 + $0x560] sm:$0xff]
    %v199 = vld [vmem:[#allocation2 + $0x568] sm:$0xff]
    %v200 = vld [vmem:[#allocation2 + $0x570] sm:$0xff]
    %v201 = vld [vmem:[#allocation2 + $0x578] sm:$0xff]
    %v202 = vld [vmem:[#allocation2 + $0x580] sm:$0xff]
    %v203 = vld [vmem:[#allocation2 + $0x588] sm:$0xff]
    %v204 = vld [vmem:[#allocation2 + $0x590] sm:$0xff]
    %v205 = vld [vmem:[#allocation2 + $0x598] sm:$0xff]
    %v206 = vld [vmem:[#allocation2 + $0x5a0] sm:$0xff]
    %v207 = vld [vmem:[#allocation2 + $0x5a8] sm:$0xff]
    %v208 = vld [vmem:[#allocation2 + $0x5b0] sm:$0xff]
    %v209 = vld [vmem:[#allocation2 + $0x5b8] sm:$0xff]
    %v210 = vld [vmem:[#allocation2 + $0x5c0] sm:$0xff]
    %v211 = vld [vmem:[#allocation2 + $0x5c8] sm:$0xff]
    %v212 = vld [vmem:[#allocation2 + $0x5d0] sm:$0xff]
    %v213 = vld [vmem:[#allocation2 + $0x5d8] sm:$0xff]
    %v214 = vld [vmem:[#allocation2 + $0x5e0] sm:$0xff]
    %v215 = vld [vmem:[#allocation2 + $0x5e8] sm:$0xff]
    %v216 = vld [vmem:[#allocation2 + $0x5f0] sm:$0xff]
    %v217 = vld [vmem:[#allocation2 + $0x5f8] sm:$0xff]
    %v218 = vld [vmem:[#allocation2 + $0x600] sm:$0xff]
    %v219 = vld [vmem:[#allocation2 + $0x608] sm:$0xff]
    %v220 = vld [vmem:[#allocation2 + $0x610] sm:$0xff]
    %v221 = vld [vmem:[#allocation2 + $0x618] sm:$0xff]
    %v222 = vld [vmem:[#allocation2 + $0x620] sm:$0xff]
    %v223 = vld [vmem:[#allocation2 + $0x628] sm:$0xff]
    %v224 = vld [vmem:[#allocation2 + $0x630] sm:$0xff]
    %v225 = vld [vmem:[#allocation2 + $0x638] sm:$0xff]
    %v226 = vld [vmem:[#allocation2 + $0x640] sm:$0xff]
    %v227 = vld [vmem:[#allocation2 + $0x648] sm:$0xff]
    %v228 = vld [vmem:[#allocation2 + $0x650] sm:$0xff]
    %v229 = vld [vmem:[#allocation2 + $0x658] sm:$0xff]
    %v230 = vld [vmem:[#allocation2 + $0x660] sm:$0xff]
    %v231 = vld [vmem:[#allocation2 + $0x668] sm:$0xff]
    %v232 = vld [vmem:[#allocation2 + $0x670] sm:$0xff]
    %v233 = vld [vmem:[#allocation2 + $0x678] sm:$0xff]
    %v234 = vld [vmem:[#allocation2 + $0x680] sm:$0xff]
    %v235 = vld [vmem:[#allocation2 + $0x688] sm:$0xff]
    %v236 = vld [vmem:[#allocation2 + $0x690] sm:$0xff]
    %v237 = vld [vmem:[#allocation2 + $0x698] sm:$0xff]
    %v238 = vld [vmem:[#allocation2 + $0x6a0] sm:$0xff]
    %v239 = vld [vmem:[#allocation2 + $0x6a8] sm:$0xff]
    %v240 = vld [vmem:[#allocation2 + $0x6b0] sm:$0xff]
    %v241 = vld [vmem:[#allocation2 + $0x6b8] sm:$0xff]
    %v242 = vld [vmem:[#allocation2 + $0x6c0] sm:$0xff]
    %v243 = vld [vmem:[#allocation2 + $0x6c8] sm:$0xff]
    %v244 = vld [vmem:[#allocation2 + $0x6d0] sm:$0xff]
    %v245 = vld [vmem:[#allocation2 + $0x6d8] sm:$0xff]
    %v246 = vld [vmem:[#allocation2 + $0x6e0] sm:$0xff]
    %v247 = vld [vmem:[#allocation2 + $0x6e8] sm:$0xff]
    %v248 = vld [vmem:[#allocation2 + $0x6f0] sm:$0xff]
    %v249 = vld [vmem:[#allocation2 + $0x6f8] sm:$0xff]
    %v250 = vld [vmem:[#allocation2 + $0x700] sm:$0xff]
    %v251 = vld [vmem:[#allocation2 + $0x708] sm:$0xff]
    %v252 = vld [vmem:[#allocation2 + $0x710] sm:$0xff]
    %v253 = vld [vmem:[#allocation2 + $0x718] sm:$0xff]
    %v254 = vld [vmem:[#allocation2 + $0x720] sm:$0xff]
    %v255 = vld [vmem:[#allocation2 + $0x728] sm:$0xff]
    %v256 = vld [vmem:[#allocation2 + $0x730] sm:$0xff]
    %v257 = vld [vmem:[#allocation2 + $0x738] sm:$0xff]
    %v258 = vld [vmem:[#allocation2 + $0x740] sm:$0xff]
    %v259 = vld [vmem:[#allocation2 + $0x748] sm:$0xff]
    %v260 = vld [vmem:[#allocation2 + $0x750] sm:$0xff]
    %v261 = vld [vmem:[#allocation2 + $0x758] sm:$0xff]
    %v262 = vld [vmem:[#allocation2 + $0x760] sm:$0xff]
    %v263 = vld [vmem:[#allocation2 + $0x768] sm:$0xff]
    %v264 = vld [vmem:[#allocation2 + $0x770] sm:$0xff]
    %v265 = vld [vmem:[#allocation2 + $0x778] sm:$0xff]
    %v266 = vld [vmem:[#allocation2 + $0x780] sm:$0xff]
    %v267 = vld [vmem:[#allocation2 + $0x788] sm:$0xff]
    %v268 = vld [vmem:[#allocation2 + $0x790] sm:$0xff]
    %v269 = vld [vmem:[#allocation2 + $0x798] sm:$0xff]
    %v270 = vld [vmem:[#allocation2 + $0x7a0] sm:$0xff]
    %v271 = vld [vmem:[#allocation2 + $0x7a8] sm:$0xff]
    %v272 = vld [vmem:[#allocation2 + $0x7b0] sm:$0xff]
    %v273 = vld [vmem:[#allocation2 + $0x7b8] sm:$0xff]
    %v274 = vld [vmem:[#allocation2 + $0x7c0] sm:$0xff]
    %v275 = vld [vmem:[#allocation2 + $0x7c8] sm:$0xff]
    %v276 = vld [vmem:[#allocation2 + $0x7d0] sm:$0xff]
    %v277 = vld [vmem:[#allocation2 + $0x7d8] sm:$0xff]
    %v278 = vld [vmem:[#allocation2 + $0x7e0] sm:$0xff]
    %v279 = vld [vmem:[#allocation2 + $0x7e8] sm:$0xff]
    %v280 = vld [vmem:[#allocation2 + $0x7f0] sm:$0xff]
    %v281 = vld [vmem:[#allocation2 + $0x7f8] sm:$0xff]
    %v282 = vld [vmem:[%s1] sm:$0xff]
    %v283 = vld [vmem:[%s1 + $0x8] sm:$0xff]
    %v284 = vld [vmem:[%s1 + $0x10] sm:$0xff]
    %v285 = vld [vmem:[%s1 + $0x18] sm:$0xff]
    %v286 = vld [vmem:[%s1 + $0x20] sm:$0xff]
    %v287 = vld [vmem:[%s1 + $0x28] sm:$0xff]
    %v288 = vld [vmem:[%s1 + $0x30] sm:$0xff]
    %v289 = vld [vmem:[%s1 + $0x38] sm:$0xff]
    %v290 = vld [vmem:[%s1 + $0x40] sm:$0xff]
    %v291 = vld [vmem:[%s1 + $0x48] sm:$0xff]
    %v292 = vld [vmem:[%s1 + $0x50] sm:$0xff]
    %v293 = vld [vmem:[%s1 + $0x58] sm:$0xff]
    %v294 = vld [vmem:[%s1 + $0x60] sm:$0xff]
    %v295 = vld [vmem:[%s1 + $0x68] sm:$0xff]
    %v296 = vld [vmem:[%s1 + $0x70] sm:$0xff]
    %v297 = vld [vmem:[%s1 + $0x78] sm:$0xff]
    %v298 = vld [vmem:[%s1 + $0x80] sm:$0xff]
    %v299 = vld [vmem:[%s1 + $0x88] sm:$0xff]
    %v300 = vld [vmem:[%s1 + $0x90] sm:$0xff]
    %v301 = vld [vmem:[%s1 + $0x98] sm:$0xff]
    %v302 = vld [vmem:[%s1 + $0xa0] sm:$0xff]
    %v303 = vld [vmem:[%s1 + $0xa8] sm:$0xff]
    %v304 = vld [vmem:[%s1 + $0xb0] sm:$0xff]
    %v305 = vld [vmem:[%s1 + $0xb8] sm:$0xff]
    %v306 = vld [vmem:[%s1 + $0xc0] sm:$0xff]
    %v307 = vld [vmem:[%s1 + $0xc8] sm:$0xff]
    %v308 = vld [vmem:[%s1 + $0xd0] sm:$0xff]
    %v309 = vld [vmem:[%s1 + $0xd8] sm:$0xff]
    %v310 = vld [vmem:[%s1 + $0xe0] sm:$0xff]
    %v311 = vld [vmem:[%s1 + $0xe8] sm:$0xff]
    %v312 = vld [vmem:[%s1 + $0xf0] sm:$0xff]
    %v313 = vld [vmem:[%s1 + $0xf8] sm:$0xff]
    %v314 = vld [vmem:[%s1 + $0x100] sm:$0xff]
    %v315 = vld [vmem:[%s1 + $0x108] sm:$0xff]
    %v316 = vld [vmem:[%s1 + $0x110] sm:$0xff]
    %v317 = vld [vmem:[%s1 + $0x118] sm:$0xff]
    %v318 = vld [vmem:[%s1 + $0x120] sm:$0xff]
    %v319 = vld [vmem:[%s1 + $0x128] sm:$0xff]
    %v320 = vld [vmem:[%s1 + $0x130] sm:$0xff]
    %v321 = vld [vmem:[%s1 + $0x138] sm:$0xff]
    %v322 = vld [vmem:[%s1 + $0x140] sm:$0xff]
    %v323 = vld [vmem:[%s1 + $0x148] sm:$0xff]
    %v324 = vld [vmem:[%s1 + $0x150] sm:$0xff]
    %v325 = vld [vmem:[%s1 + $0x158] sm:$0xff]
    %v326 = vld [vmem:[%s1 + $0x160] sm:$0xff]
    %v327 = vld [vmem:[%s1 + $0x168] sm:$0xff]
    %v328 = vld [vmem:[%s1 + $0x170] sm:$0xff]
    %v329 = vld [vmem:[%s1 + $0x178] sm:$0xff]
    %v330 = vld [vmem:[%s1 + $0x180] sm:$0xff]
    %v331 = vld [vmem:[%s1 + $0x188] sm:$0xff]
    %v332 = vld [vmem:[%s1 + $0x190] sm:$0xff]
    %v333 = vld [vmem:[%s1 + $0x198] sm:$0xff]
    %v334 = vld [vmem:[%s1 + $0x1a0] sm:$0xff]
    %v335 = vld [vmem:[%s1 + $0x1a8] sm:$0xff]
    %v336 = vld [vmem:[%s1 + $0x1b0] sm:$0xff]
    %v337 = vld [vmem:[%s1 + $0x1b8] sm:$0xff]
    %v338 = vld [vmem:[%s1 + $0x1c0] sm:$0xff]
    %v339 = vld [vmem:[%s1 + $0x1c8] sm:$0xff]
    %v340 = vld [vmem:[%s1 + $0x1d0] sm:$0xff]
    %v341 = vld [vmem:[%s1 + $0x1d8] sm:$0xff]
    %v342 = vld [vmem:[%s1 + $0x1e0] sm:$0xff]
    %v343 = vld [vmem:[%s1 + $0x1e8] sm:$0xff]
    %v344 = vld [vmem:[%s1 + $0x1f0] sm:$0xff]
    %v345 = vld [vmem:[%s1 + $0x1f8] sm:$0xff]
    %v346 = vld [vmem:[%s1 + $0x200] sm:$0xff]
    %v347 = vld [vmem:[%s1 + $0x208] sm:$0xff]
    %v348 = vld [vmem:[%s1 + $0x210] sm:$0xff]
    %v349 = vld [vmem:[%s1 + $0x218] sm:$0xff]
    %v350 = vld [vmem:[%s1 + $0x220] sm:$0xff]
    %v351 = vld [vmem:[%s1 + $0x228] sm:$0xff]
    %v352 = vld [vmem:[%s1 + $0x230] sm:$0xff]
    %v353 = vld [vmem:[%s1 + $0x238] sm:$0xff]
    %v354 = vld [vmem:[%s1 + $0x240] sm:$0xff]
    %v355 = vld [vmem:[%s1 + $0x248] sm:$0xff]
    %v356 = vld [vmem:[%s1 + $0x250] sm:$0xff]
    %v357 = vld [vmem:[%s1 + $0x258] sm:$0xff]
    %v358 = vld [vmem:[%s1 + $0x260] sm:$0xff]
    %v359 = vld [vmem:[%s1 + $0x268] sm:$0xff]
    %v360 = vld [vmem:[%s1 + $0x270] sm:$0xff]
    %v361 = vld [vmem:[%s1 + $0x278] sm:$0xff]
    %v362 = vld [vmem:[%s1 + $0x280] sm:$0xff]
    %v363 = vld [vmem:[%s1 + $0x288] sm:$0xff]
    %v364 = vld [vmem:[%s1 + $0x290] sm:$0xff]
    %v365 = vld [vmem:[%s1 + $0x298] sm:$0xff]
    %v366 = vld [vmem:[%s1 + $0x2a0] sm:$0xff]
    %v367 = vld [vmem:[%s1 + $0x2a8] sm:$0xff]
    %v368 = vld [vmem:[%s1 + $0x2b0] sm:$0xff]
    %v369 = vld [vmem:[%s1 + $0x2b8] sm:$0xff]
    %v370 = vld [vmem:[%s1 + $0x2c0] sm:$0xff]
    %v371 = vld [vmem:[%s1 + $0x2c8] sm:$0xff]
    %v372 = vld [vmem:[%s1 + $0x2d0] sm:$0xff]
    %v373 = vld [vmem:[%s1 + $0x2d8] sm:$0xff]
    %v374 = vld [vmem:[%s1 + $0x2e0] sm:$0xff]
    %v375 = vld [vmem:[%s1 + $0x2e8] sm:$0xff]
    %v376 = vld [vmem:[%s1 + $0x2f0] sm:$0xff]
    %v377 = vld [vmem:[%s1 + $0x2f8] sm:$0xff]
    %v378 = vld [vmem:[%s1 + $0x300] sm:$0xff]
    %v379 = vld [vmem:[%s1 + $0x308] sm:$0xff]
    %v380 = vld [vmem:[%s1 + $0x310] sm:$0xff]
    %v381 = vld [vmem:[%s1 + $0x318] sm:$0xff]
    %v382 = vld [vmem:[%s1 + $0x320] sm:$0xff]
    %v383 = vld [vmem:[%s1 + $0x328] sm:$0xff]
    %v384 = vld [vmem:[%s1 + $0x330] sm:$0xff]
    %v385 = vld [vmem:[%s1 + $0x338] sm:$0xff]
    %v386 = vld [vmem:[%s1 + $0x340] sm:$0xff]
    %v387 = vld [vmem:[%s1 + $0x348] sm:$0xff]
    %v388 = vld [vmem:[%s1 + $0x350] sm:$0xff]
    %v389 = vld [vmem:[%s1 + $0x358] sm:$0xff]
    %v390 = vld [vmem:[%s1 + $0x360] sm:$0xff]
    %v391 = vld [vmem:[%s1 + $0x368] sm:$0xff]
    %v392 = vld [vmem:[%s1 + $0x370] sm:$0xff]
    %v393 = vld [vmem:[%s1 + $0x378] sm:$0xff]
    %v394 = vld [vmem:[%s1 + $0x380] sm:$0xff]
    %v395 = vld [vmem:[%s1 + $0x388] sm:$0xff]
    %v396 = vld [vmem:[%s1 + $0x390] sm:$0xff]
    %v397 = vld [vmem:[%s1 + $0x398] sm:$0xff]
    %v398 = vld [vmem:[%s1 + $0x3a0] sm:$0xff]
    %v399 = vld [vmem:[%s1 + $0x3a8] sm:$0xff]
    %v400 = vld [vmem:[%s1 + $0x3b0] sm:$0xff]
    %v401 = vld [vmem:[%s1 + $0x3b8] sm:$0xff]
    %v402 = vld [vmem:[%s1 + $0x3c0] sm:$0xff]
    %v403 = vld [vmem:[%s1 + $0x3c8] sm:$0xff]
    %v404 = vld [vmem:[%s1 + $0x3d0] sm:$0xff]
    %v405 = vld [vmem:[%s1 + $0x3d8] sm:$0xff]
    %v406 = vld [vmem:[%s1 + $0x3e0] sm:$0xff]
    %v407 = vld [vmem:[%s1 + $0x3e8] sm:$0xff]
    %v408 = vld [vmem:[%s1 + $0x3f0] sm:$0xff]
    %v409 = vld [vmem:[%s1 + $0x3f8] sm:$0xff]
    %410 = vmatprep.subr.mxu0 0.0
    %411 = vmatpush1.msra.mxu0 %v282
    %412 = vmatprep.subr.mxu0 0.0
    %413 = vmatpush1.msra.mxu0 %v283
    %414 = vmatprep.subr.mxu0 0.0
    %415 = vmatpush1.msra.mxu0 %v284
    %416 = vmatprep.subr.mxu0 0.0
    %417 = vmatpush1.msra.mxu0 %v285
    %418 = vmatprep.subr.mxu0 0.0
    %419 = vmatpush1.msra.mxu0 %v286
    %420 = vmatprep.subr.mxu0 0.0
    %421 = vmatpush1.msra.mxu0 %v287
    %422 = vmatprep.subr.mxu0 0.0
    %423 = vmatpush1.msra.mxu0 %v288
    %424 = vmatprep.subr.mxu0 0.0
    %425 = vmatpush1.msra.mxu0 %v289
    %426 = vmatprep.subr.mxu0 0.0
    %427 = vmatpush1.msra.mxu0 %v290
    %428 = vmatprep.subr.mxu0 0.0
    %429 = vmatpush1.msra.mxu0 %v291
    %430 = vmatprep.subr.mxu0 0.0
    %431 = vmatpush1.msra.mxu0 %v292
    %432 = vmatprep.subr.mxu0 0.0
    %433 = vmatpush1.msra.mxu0 %v293
    %434 = vmatprep.subr.mxu0 0.0
    %435 = vmatpush1.msra.mxu0 %v294
    %436 = vmatprep.subr.mxu0 0.0
    %437 = vmatpush1.msra.mxu0 %v295
    %438 = vmatprep.subr.mxu0 0.0
    %439 = vmatpush1.msra.mxu0 %v296
    %440 = vmatprep.subr.mxu0 0.0
    %441 = vmatpush1.msra.mxu0 %v297
    %442 = vmatprep.subr.mxu0 0.0
    %443 = vmatpush1.msra.mxu0 %v298
    %444 = vmatprep.subr.mxu0 0.0
    %445 = vmatpush1.msra.mxu0 %v299
    %446 = vmatprep.subr.mxu0 0.0
    %447 = vmatpush1.msra.mxu0 %v300
    %448 = vmatprep.subr.mxu0 0.0
    %449 = vmatpush1.msra.mxu0 %v301
    %450 = vmatprep.subr.mxu0 0.0
    %451 = vmatpush1.msra.mxu0 %v302
    %452 = vmatprep.subr.mxu0 0.0
    %453 = vmatpush1.msra.mxu0 %v303
    %454 = vmatprep.subr.mxu0 0.0
    %455 = vmatpush1.msra.mxu0 %v304
    %456 = vmatprep.subr.mxu0 0.0
    %457 = vmatpush1.msra.mxu0 %v305
    %458 = vmatprep.subr.mxu0 0.0
    %459 = vmatpush1.msra.mxu0 %v306
    %460 = vmatprep.subr.mxu0 0.0
    %461 = vmatpush1.msra.mxu0 %v307
    %462 = vmatprep.subr.mxu0 0.0
    %463 = vmatpush1.msra.mxu0 %v308
    %464 = vmatprep.subr.mxu0 0.0
    %465 = vmatpush1.msra.mxu0 %v309
    %466 = vmatprep.subr.mxu0 0.0
    %467 = vmatpush1.msra.mxu0 %v310
    %468 = vmatprep.subr.mxu0 0.0
    %469 = vmatpush1.msra.mxu0 %v311
    %470 = vmatprep.subr.mxu0 0.0
    %471 = vmatpush1.msra.mxu0 %v312
    %472 = vmatprep.subr.mxu0 0.0
    %473 = vmatpush1.msra.mxu0 %v313
    %474 = vmatprep.mubr.f32.mxu0 %v27
    %475 = vmatmul.mubr.f32.gmra.mrb[0].mxu0 %v26
    %v476 = vpop.f32.mrb[0].mxu0
    %v477 = vadd.f32 0.0, %v476
    %v478 = vpop.f32.mrb[0].mxu0
    %479 = vmatprep.mubr.f32.mxu0 %v35
    %480 = vmatmul.mubr.f32.gmra.mrb[0].mxu0 %v34
    %v481 = vpop.f32.mrb[0].mxu0
    %v482 = vadd.f32 0.0, %v481
    %v483 = vpop.f32.mrb[0].mxu0
    %484 = vmatprep.mubr.f32.mxu0 %v43
    %485 = vmatmul.mubr.f32.gmra.mrb[0].mxu0 %v42
    %v486 = vpop.f32.mrb[0].mxu0
    %v487 = vadd.f32 0.0, %v486
    %v488 = vpop.f32.mrb[0].mxu0
    %489 = vmatprep.mubr.f32.mxu0 %v51
    %490 = vmatmul.mubr.f32.gmra.mrb[0].mxu0 %v50
    %v491 = vpop.f32.mrb[0].mxu0
    %v492 = vadd.f32 0.0, %v491
    %v493 = vpop.f32.mrb[0].mxu0
    %494 = vmatprep.mubr.f32.mxu0 %v59
    %495 = vmatmul.mubr.f32.gmra.mrb[0].mxu0 %v58
    %v496 = vpop.f32.mrb[0].mxu0
    %v497 = vadd.f32 0.0, %v496
    %v498 = vpop.f32.mrb[0].mxu0
    %499 = vmatprep.mubr.f32.mxu0 %v67
    %500 = vmatmul.mubr.f32.gmra.mrb[0].mxu0 %v66
    %v501 = vpop.f32.mrb[0].mxu0
    %v502 = vadd.f32 0.0, %v501
    %v503 = vpop.f32.mrb[0].mxu0
    %504 = vmatprep.mubr.f32.mxu0 %v75
    %505 = vmatmul.mubr.f32.gmra.mrb[0].mxu0 %v74
    %v506 = vpop.f32.mrb[0].mxu0
    %v507 = vadd.f32 0.0, %v506
    %v508 = vpop.f32.mrb[0].mxu0
    %509 = vmatprep.mubr.f32.mxu0 %v83
    %510 = vmatmul.mubr.f32.gmra.mrb[0].mxu0 %v82
    %v511 = vpop.f32.mrb[0].mxu0
    %v512 = vadd.f32 0.0, %v511
    %v513 = vpop.f32.mrb[0].mxu0
    %514 = vmatprep.mubr.f32.mxu0 %v91
    %515 = vmatmul.mubr.f32.gmra.mrb[0].mxu0 %v90
    %v516 = vpop.f32.mrb[0].mxu0
    %v517 = vadd.f32 0.0, %v516
    %v518 = vpop.f32.mrb[0].mxu0
    %519 = vmatprep.mubr.f32.mxu0 %v99
    %520 = vmatmul.mubr.f32.gmra.mrb[0].mxu0 %v98
    %v521 = vpop.f32.mrb[0].mxu0
    %v522 = vadd.f32 0.0, %v521
    %v523 = vpop.f32.mrb[0].mxu0
    %524 = vmatprep.mubr.f32.mxu0 %v107
    %525 = vmatmul.mubr.f32.gmra.mrb[0].mxu0 %v106
    %v526 = vpop.f32.mrb[0].mxu0
    %v527 = vadd.f32 0.0, %v526
    %v528 = vpop.f32.mrb[0].mxu0
    %529 = vmatprep.mubr.f32.mxu0 %v115
    %530 = vmatmul.mubr.f32.gmra.mrb[0].mxu0 %v114
    %v531 = vpop.f32.mrb[0].mxu0
    %v532 = vadd.f32 0.0, %v531
    %v533 = vpop.f32.mrb[0].mxu0
    %534 = vmatprep.mubr.f32.mxu0 %v123
    %535 = vmatmul.mubr.f32.gmra.mrb[0].mxu0 %v122
    %v536 = vpop.f32.mrb[0].mxu0
    %v537 = vadd.f32 0.0, %v536
    %v538 = vpop.f32.mrb[0].mxu0
    %539 = vmatprep.mubr.f32.mxu0 %v131
    %540 = vmatmul.mubr.f32.gmra.mrb[0].mxu0 %v130
    %v541 = vpop.f32.mrb[0].mxu0
    %v542 = vadd.f32 0.0, %v541
    %v543 = vpop.f32.mrb[0].mxu0
    %544 = vmatprep.mubr.f32.mxu0 %v139
    %545 = vmatmul.mubr.f32.gmra.mrb[0].mxu0 %v138
    %v546 = vpop.f32.mrb[0].mxu0
    %v547 = vadd.f32 0.0, %v546
    %v548 = vpop.f32.mrb[0].mxu0
    %549 = vmatprep.mubr.f32.mxu0 %v147
    %550 = vmatmul.mubr.f32.gmra.mrb[0].mxu0 %v146
    %v551 = vpop.f32.mrb[0].mxu0
    %v552 = vadd.f32 0.0, %v551
    %v553 = vpop.f32.mrb[0].mxu0
    %554 = vmatprep.mubr.f32.mxu0 %v155
    %555 = vmatmul.mubr.f32.gmra.mrb[0].mxu0 %v154
    %v556 = vpop.f32.mrb[0].mxu0
    %v557 = vadd.f32 0.0, %v556
    %v558 = vpop.f32.mrb[0].mxu0
    %559 = vmatprep.mubr.f32.mxu0 %v163
    %560 = vmatmul.mubr.f32.gmra.mrb[0].mxu0 %v162
    %v561 = vpop.f32.mrb[0].mxu0
    %v562 = vadd.f32 0.0, %v561
    %v563 = vpop.f32.mrb[0].mxu0
    %564 = vmatprep.mubr.f32.mxu0 %v171
    %565 = vmatmul.mubr.f32.gmra.mrb[0].mxu0 %v170
    %v566 = vpop.f32.mrb[0].mxu0
    %v567 = vadd.f32 0.0, %v566
    %v568 = vpop.f32.mrb[0].mxu0
    %569 = vmatprep.mubr.f32.mxu0 %v179
    %570 = vmatmul.mubr.f32.gmra.mrb[0].mxu0 %v178
    %v571 = vpop.f32.mrb[0].mxu0
    %v572 = vadd.f32 0.0, %v571
    %v573 = vpop.f32.mrb[0].mxu0
    %574 = vmatprep.mubr.f32.mxu0 %v187
    %575 = vmatmul.mubr.f32.gmra.mrb[0].mxu0 %v186
    %v576 = vpop.f32.mrb[0].mxu0
    %v577 = vadd.f32 0.0, %v576
    %v578 = vpop.f32.mrb[0].mxu0
    %579 = vmatprep.mubr.f32.mxu0 %v195
    %580 = vmatmul.mubr.f32.gmra.mrb[0].mxu0 %v194
    %v581 = vpop.f32.mrb[0].mxu0
    %v582 = vadd.f32 0.0, %v581
    %v583 = vpop.f32.mrb[0].mxu0
    %584 = vmatprep.mubr.f32.mxu0 %v203
    %585 = vmatmul.mubr.f32.gmra.mrb[0].mxu0 %v202
    %v586 = vpop.f32.mrb[0].mxu0
    %v587 = vadd.f32 0.0, %v586
    %v588 = vpop.f32.mrb[0].mxu0
    %589 = vmatprep.mubr.f32.mxu0 %v211
    %590 = vmatmul.mubr.f32.gmra.mrb[0].mxu0 %v210
    %v591 = vpop.f32.mrb[0].mxu0
    %v592 = vadd.f32 0.0, %v591
    %v593 = vpop.f32.mrb[0].mxu0
    %594 = vmatprep.mubr.f32.mxu0 %v219
    %595 = vmatmul.mubr.f32.gmra.mrb[0].mxu0 %v218
    %v596 = vpop.f32.mrb[0].mxu0
    %v597 = vadd.f32 0.0, %v596
    %v598 = vpop.f32.mrb[0].mxu0
    %599 = vmatprep.mubr.f32.mxu0 %v227
    %600 = vmatmul.mubr.f32.gmra.mrb[0].mxu0 %v226
    %v601 = vpop.f32.mrb[0].mxu0
    %v602 = vadd.f32 0.0, %v601
    %v603 = vpop.f32.mrb[0].mxu0
    %604 = vmatprep.mubr.f32.mxu0 %v235
    %605 = vmatmul.mubr.f32.gmra.mrb[0].mxu0 %v234
    %v606 = vpop.f32.mrb[0].mxu0
    %v607 = vadd.f32 0.0, %v606
    %v608 = vpop.f32.mrb[0].mxu0
    %609 = vmatprep.mubr.f32.mxu0 %v243
    %610 = vmatmul.mubr.f32.gmra.mrb[0].mxu0 %v242
    %v611 = vpop.f32.mrb[0].mxu0
    %v612 = vadd.f32 0.0, %v611
    %v613 = vpop.f32.mrb[0].mxu0
    %614 = vmatprep.mubr.f32.mxu0 %v251
    %615 = vmatmul.mubr.f32.gmra.mrb[0].mxu0 %v250
    %v616 = vpop.f32.mrb[0].mxu0
    %v617 = vadd.f32 0.0, %v616
    %v618 = vpop.f32.mrb[0].mxu0
    %619 = vmatprep.mubr.f32.mxu0 %v259
    %620 = vmatmul.mubr.f32.gmra.mrb[0].mxu0 %v258
    %v621 = vpop.f32.mrb[0].mxu0
    %v622 = vadd.f32 0.0, %v621
    %v623 = vpop.f32.mrb[0].mxu0
    %624 = vmatprep.mubr.f32.mxu0 %v267
    %625 = vmatmul.mubr.f32.gmra.mrb[0].mxu0 %v266
    %v626 = vpop.f32.mrb[0].mxu0
    %v627 = vadd.f32 0.0, %v626
    %v628 = vpop.f32.mrb[0].mxu0
    %629 = vmatprep.mubr.f32.mxu0 %v275
    %630 = vmatmul.mubr.f32.gmra.mrb[0].mxu0 %v274
    %v631 = vpop.f32.mrb[0].mxu0
    %v632 = vadd.f32 0.0, %v631
    %v633 = vpop.f32.mrb[0].mxu0
    %634 = vdwg.mxu0
    %635 = vmatprep.subr.mxu0 0.0
    %636 = vmatpush1.msra.mxu0 %v314
    %637 = vmatprep.subr.mxu0 0.0
    %638 = vmatpush1.msra.mxu0 %v315
    %639 = vmatprep.subr.mxu0 0.0
    %640 = vmatpush1.msra.mxu0 %v316
    %641 = vmatprep.subr.mxu0 0.0
    %642 = vmatpush1.msra.mxu0 %v317
    %643 = vmatprep.subr.mxu0 0.0
    %644 = vmatpush1.msra.mxu0 %v318
    %645 = vmatprep.subr.mxu0 0.0
    %646 = vmatpush1.msra.mxu0 %v319
    %647 = vmatprep.subr.mxu0 0.0
    %648 = vmatpush1.msra.mxu0 %v320
    %649 = vmatprep.subr.mxu0 0.0
    %650 = vmatpush1.msra.mxu0 %v321
    %651 = vmatprep.subr.mxu0 0.0
    %652 = vmatpush1.msra.mxu0 %v322
    %653 = vmatprep.subr.mxu0 0.0
    %654 = vmatpush1.msra.mxu0 %v323
    %655 = vmatprep.subr.mxu0 0.0
    %656 = vmatpush1.msra.mxu0 %v324
    %657 = vmatprep.subr.mxu0 0.0
    %658 = vmatpush1.msra.mxu0 %v325
    %659 = vmatprep.subr.mxu0 0.0
    %660 = vmatpush1.msra.mxu0 %v326
    %661 = vmatprep.subr.mxu0 0.0
    %662 = vmatpush1.msra.mxu0 %v327
    %663 = vmatprep.subr.mxu0 0.0
    %664 = vmatpush1.msra.mxu0 %v328
    %665 = vmatprep.subr.mxu0 0.0
    %666 = vmatpush1.msra.mxu0 %v329
    %667 = vmatprep.subr.mxu0 0.0
    %668 = vmatpush1.msra.mxu0 %v330
    %669 = vmatprep.subr.mxu0 0.0
    %670 = vmatpush1.msra.mxu0 %v331
    %671 = vmatprep.subr.mxu0 0.0
    %672 = vmatpush1.msra.mxu0 %v332
    %673 = vmatprep.subr.mxu0 0.0
    %674 = vmatpush1.msra.mxu0 %v333
    %675 = vmatprep.subr.mxu0 0.0
    %676 = vmatpush1.msra.mxu0 %v334
    %677 = vmatprep.subr.mxu0 0.0
    %678 = vmatpush1.msra.mxu0 %v335
    %679 = vmatprep.subr.mxu0 0.0
    %680 = vmatpush1.msra.mxu0 %v336
    %681 = vmatprep.subr.mxu0 0.0
    %682 = vmatpush1.msra.mxu0 %v337
    %683 = vmatprep.subr.mxu0 0.0
    %684 = vmatpush1.msra.mxu0 %v338
    %685 = vmatprep.subr.mxu0 0.0
    %686 = vmatpush1.msra.mxu0 %v339
    %687 = vmatprep.subr.mxu0 0.0
    %688 = vmatpush1.msra.mxu0 %v340
    %689 = vmatprep.subr.mxu0 0.0
    %690 = vmatpush1.msra.mxu0 %v341
    %691 = vmatprep.subr.mxu0 0.0
    %692 = vmatpush1.msra.mxu0 %v342
    %693 = vmatprep.subr.mxu0 0.0
    %694 = vmatpush1.msra.mxu0 %v343
    %695 = vmatprep.subr.mxu0 0.0
    %696 = vmatpush1.msra.mxu0 %v344
    %697 = vmatprep.subr.mxu0 0.0
    %698 = vmatpush1.msra.mxu0 %v345
    %699 = vmatprep.mubr.f32.mxu0 %v29
    %700 = vmatmul.mubr.f32.gmra.mrb[0].mxu0 %v28
    %v701 = vpop.f32.mrb[0].mxu0
    %v702 = vadd.f32 %v477, %v701
    %v703 = vpop.f32.mrb[0].mxu0
    %704 = vmatprep.mubr.f32.mxu0 %v37
    %705 = vmatmul.mubr.f32.gmra.mrb[0].mxu0 %v36
    %v706 = vpop.f32.mrb[0].mxu0
    %v707 = vadd.f32 %v482, %v706
    %v708 = vpop.f32.mrb[0].mxu0
    %709 = vmatprep.mubr.f32.mxu0 %v45
    %710 = vmatmul.mubr.f32.gmra.mrb[0].mxu0 %v44
    %v711 = vpop.f32.mrb[0].mxu0
    %v712 = vadd.f32 %v487, %v711
    %v713 = vpop.f32.mrb[0].mxu0
    %714 = vmatprep.mubr.f32.mxu0 %v53
    %715 = vmatmul.mubr.f32.gmra.mrb[0].mxu0 %v52
    %v716 = vpop.f32.mrb[0].mxu0
    %v717 = vadd.f32 %v492, %v716
    %v718 = vpop.f32.mrb[0].mxu0
    %719 = vmatprep.mubr.f32.mxu0 %v61
    %720 = vmatmul.mubr.f32.gmra.mrb[0].mxu0 %v60
    %v721 = vpop.f32.mrb[0].mxu0
    %v722 = vadd.f32 %v497, %v721
    %v723 = vpop.f32.mrb[0].mxu0
    %724 = vmatprep.mubr.f32.mxu0 %v69
    %725 = vmatmul.mubr.f32.gmra.mrb[0].mxu0 %v68
    %v726 = vpop.f32.mrb[0].mxu0
    %v727 = vadd.f32 %v502, %v726
    %v728 = vpop.f32.mrb[0].mxu0
    %729 = vmatprep.mubr.f32.mxu0 %v77
    %730 = vmatmul.mubr.f32.gmra.mrb[0].mxu0 %v76
    %v731 = vpop.f32.mrb[0].mxu0
    %v732 = vadd.f32 %v507, %v731
    %v733 = vpop.f32.mrb[0].mxu0
    %734 = vmatprep.mubr.f32.mxu0 %v85
    %735 = vmatmul.mubr.f32.gmra.mrb[0].mxu0 %v84
    %v736 = vpop.f32.mrb[0].mxu0
    %v737 = vadd.f32 %v512, %v736
    %v738 = vpop.f32.mrb[0].mxu0
    %739 = vmatprep.mubr.f32.mxu0 %v93
    %740 = vmatmul.mubr.f32.gmra.mrb[0].mxu0 %v92
    %v741 = vpop.f32.mrb[0].mxu0
    %v742 = vadd.f32 %v517, %v741
    %v743 = vpop.f32.mrb[0].mxu0
    %744 = vmatprep.mubr.f32.mxu0 %v101
    %745 = vmatmul.mubr.f32.gmra.mrb[0].mxu0 %v100
    %v746 = vpop.f32.mrb[0].mxu0
    %v747 = vadd.f32 %v522, %v746
    %v748 = vpop.f32.mrb[0].mxu0
    %749 = vmatprep.mubr.f32.mxu0 %v109
    %750 = vmatmul.mubr.f32.gmra.mrb[0].mxu0 %v108
    %v751 = vpop.f32.mrb[0].mxu0
    %v752 = vadd.f32 %v527, %v751
    %v753 = vpop.f32.mrb[0].mxu0
    %754 = vmatprep.mubr.f32.mxu0 %v117
    %755 = vmatmul.mubr.f32.gmra.mrb[0].mxu0 %v116
    %v756 = vpop.f32.mrb[0].mxu0
    %v757 = vadd.f32 %v532, %v756
    %v758 = vpop.f32.mrb[0].mxu0
    %759 = vmatprep.mubr.f32.mxu0 %v125
    %760 = vmatmul.mubr.f32.gmra.mrb[0].mxu0 %v124
    %v761 = vpop.f32.mrb[0].mxu0
    %v762 = vadd.f32 %v537, %v761
    %v763 = vpop.f32.mrb[0].mxu0
    %764 = vmatprep.mubr.f32.mxu0 %v133
    %765 = vmatmul.mubr.f32.gmra.mrb[0].mxu0 %v132
    %v766 = vpop.f32.mrb[0].mxu0
    %v767 = vadd.f32 %v542, %v766
    %v768 = vpop.f32.mrb[0].mxu0
    %769 = vmatprep.mubr.f32.mxu0 %v141
    %770 = vmatmul.mubr.f32.gmra.mrb[0].mxu0 %v140
    %v771 = vpop.f32.mrb[0].mxu0
    %v772 = vadd.f32 %v547, %v771
    %v773 = vpop.f32.mrb[0].mxu0
    %774 = vmatprep.mubr.f32.mxu0 %v149
    %775 = vmatmul.mubr.f32.gmra.mrb[0].mxu0 %v148
    %v776 = vpop.f32.mrb[0].mxu0
    %v777 = vadd.f32 %v552, %v776
    %v778 = vpop.f32.mrb[0].mxu0
    %779 = vmatprep.mubr.f32.mxu0 %v157
    %780 = vmatmul.mubr.f32.gmra.mrb[0].mxu0 %v156
    %v781 = vpop.f32.mrb[0].mxu0
    %v782 = vadd.f32 %v557, %v781
    %v783 = vpop.f32.mrb[0].mxu0
    %784 = vmatprep.mubr.f32.mxu0 %v165
    %785 = vmatmul.mubr.f32.gmra.mrb[0].mxu0 %v164
    %v786 = vpop.f32.mrb[0].mxu0
    %v787 = vadd.f32 %v562, %v786
    %v788 = vpop.f32.mrb[0].mxu0
    %789 = vmatprep.mubr.f32.mxu0 %v173
    %790 = vmatmul.mubr.f32.gmra.mrb[0].mxu0 %v172
    %v791 = vpop.f32.mrb[0].mxu0
    %v792 = vadd.f32 %v567, %v791
    %v793 = vpop.f32.mrb[0].mxu0
    %794 = vmatprep.mubr.f32.mxu0 %v181
    %795 = vmatmul.mubr.f32.gmra.mrb[0].mxu0 %v180
    %v796 = vpop.f32.mrb[0].mxu0
    %v797 = vadd.f32 %v572, %v796
    %v798 = vpop.f32.mrb[0].mxu0
    %799 = vmatprep.mubr.f32.mxu0 %v189
    %800 = vmatmul.mubr.f32.gmra.mrb[0].mxu0 %v188
    %v801 = vpop.f32.mrb[0].mxu0
    %v802 = vadd.f32 %v577, %v801
    %v803 = vpop.f32.mrb[0].mxu0
    %804 = vmatprep.mubr.f32.mxu0 %v197
    %805 = vmatmul.mubr.f32.gmra.mrb[0].mxu0 %v196
    %v806 = vpop.f32.mrb[0].mxu0
    %v807 = vadd.f32 %v582, %v806
    %v808 = vpop.f32.mrb[0].mxu0
    %809 = vmatprep.mubr.f32.mxu0 %v205
    %810 = vmatmul.mubr.f32.gmra.mrb[0].mxu0 %v204
    %v811 = vpop.f32.mrb[0].mxu0
    %v812 = vadd.f32 %v587, %v811
    %v813 = vpop.f32.mrb[0].mxu0
    %814 = vmatprep.mubr.f32.mxu0 %v213
    %815 = vmatmul.mubr.f32.gmra.mrb[0].mxu0 %v212
    %v816 = vpop.f32.mrb[0].mxu0
    %v817 = vadd.f32 %v592, %v816
    %v818 = vpop.f32.mrb[0].mxu0
    %819 = vmatprep.mubr.f32.mxu0 %v221
    %820 = vmatmul.mubr.f32.gmra.mrb[0].mxu0 %v220
    %v821 = vpop.f32.mrb[0].mxu0
    %v822 = vadd.f32 %v597, %v821
    %v823 = vpop.f32.mrb[0].mxu0
    %824 = vmatprep.mubr.f32.mxu0 %v229
    %825 = vmatmul.mubr.f32.gmra.mrb[0].mxu0 %v228
    %v826 = vpop.f32.mrb[0].mxu0
    %v827 = vadd.f32 %v602, %v826
    %v828 = vpop.f32.mrb[0].mxu0
    %829 = vmatprep.mubr.f32.mxu0 %v237
    %830 = vmatmul.mubr.f32.gmra.mrb[0].mxu0 %v236
    %v831 = vpop.f32.mrb[0].mxu0
    %v832 = vadd.f32 %v607, %v831
    %v833 = vpop.f32.mrb[0].mxu0
    %834 = vmatprep.mubr.f32.mxu0 %v245
    %835 = vmatmul.mubr.f32.gmra.mrb[0].mxu0 %v244
    %v836 = vpop.f32.mrb[0].mxu0
    %v837 = vadd.f32 %v612, %v836
    %v838 = vpop.f32.mrb[0].mxu0
    %839 = vmatprep.mubr.f32.mxu0 %v253
    %840 = vmatmul.mubr.f32.gmra.mrb[0].mxu0 %v252
    %v841 = vpop.f32.mrb[0].mxu0
    %v842 = vadd.f32 %v617, %v841
    %v843 = vpop.f32.mrb[0].mxu0
    %844 = vmatprep.mubr.f32.mxu0 %v261
    %845 = vmatmul.mubr.f32.gmra.mrb[0].mxu0 %v260
    %v846 = vpop.f32.mrb[0].mxu0
    %v847 = vadd.f32 %v622, %v846
    %v848 = vpop.f32.mrb[0].mxu0
    %849 = vmatprep.mubr.f32.mxu0 %v269
    %850 = vmatmul.mubr.f32.gmra.mrb[0].mxu0 %v268
    %v851 = vpop.f32.mrb[0].mxu0
    %v852 = vadd.f32 %v627, %v851
    %v853 = vpop.f32.mrb[0].mxu0
    %854 = vmatprep.mubr.f32.mxu0 %v277
    %855 = vmatmul.mubr.f32.gmra.mrb[0].mxu0 %v276
    %v856 = vpop.f32.mrb[0].mxu0
    %v857 = vadd.f32 %v632, %v856
    %v858 = vpop.f32.mrb[0].mxu0
    %859 = vdwg.mxu0
    %860 = vmatprep.subr.mxu0 0.0
    %861 = vmatpush1.msra.mxu0 %v346
    %862 = vmatprep.subr.mxu0 0.0
    %863 = vmatpush1.msra.mxu0 %v347
    %864 = vmatprep.subr.mxu0 0.0
    %865 = vmatpush1.msra.mxu0 %v348
    %866 = vmatprep.subr.mxu0 0.0
    %867 = vmatpush1.msra.mxu0 %v349
    %868 = vmatprep.subr.mxu0 0.0
    %869 = vmatpush1.msra.mxu0 %v350
    %870 = vmatprep.subr.mxu0 0.0
    %871 = vmatpush1.msra.mxu0 %v351
    %872 = vmatprep.subr.mxu0 0.0
    %873 = vmatpush1.msra.mxu0 %v352
    %874 = vmatprep.subr.mxu0 0.0
    %875 = vmatpush1.msra.mxu0 %v353
    %876 = vmatprep.subr.mxu0 0.0
    %877 = vmatpush1.msra.mxu0 %v354
    %878 = vmatprep.subr.mxu0 0.0
    %879 = vmatpush1.msra.mxu0 %v355
    %880 = vmatprep.subr.mxu0 0.0
    %881 = vmatpush1.msra.mxu0 %v356
    %882 = vmatprep.subr.mxu0 0.0
    %883 = vmatpush1.msra.mxu0 %v357
    %884 = vmatprep.subr.mxu0 0.0
    %885 = vmatpush1.msra.mxu0 %v358
    %886 = vmatprep.subr.mxu0 0.0
    %887 = vmatpush1.msra.mxu0 %v359
    %888 = vmatprep.subr.mxu0 0.0
    %889 = vmatpush1.msra.mxu0 %v360
    %890 = vmatprep.subr.mxu0 0.0
    %891 = vmatpush1.msra.mxu0 %v361
    %892 = vmatprep.subr.mxu0 0.0
    %893 = vmatpush1.msra.mxu0 %v362
    %894 = vmatprep.subr.mxu0 0.0
    %895 = vmatpush1.msra.mxu0 %v363
    %896 = vmatprep.subr.mxu0 0.0
    %897 = vmatpush1.msra.mxu0 %v364
    %898 = vmatprep.subr.mxu0 0.0
    %899 = vmatpush1.msra.mxu0 %v365
    %900 = vmatprep.subr.mxu0 0.0
    %901 = vmatpush1.msra.mxu0 %v366
    %902 = vmatprep.subr.mxu0 0.0
    %903 = vmatpush1.msra.mxu0 %v367
    %904 = vmatprep.subr.mxu0 0.0
    %905 = vmatpush1.msra.mxu0 %v368
    %906 = vmatprep.subr.mxu0 0.0
    %907 = vmatpush1.msra.mxu0 %v369
    %908 = vmatprep.subr.mxu0 0.0
    %909 = vmatpush1.msra.mxu0 %v370
    %910 = vmatprep.subr.mxu0 0.0
    %911 = vmatpush1.msra.mxu0 %v371
    %912 = vmatprep.subr.mxu0 0.0
    %913 = vmatpush1.msra.mxu0 %v372
    %914 = vmatprep.subr.mxu0 0.0
    %915 = vmatpush1.msra.mxu0 %v373
    %916 = vmatprep.subr.mxu0 0.0
    %917 = vmatpush1.msra.mxu0 %v374
    %918 = vmatprep.subr.mxu0 0.0
    %919 = vmatpush1.msra.mxu0 %v375
    %920 = vmatprep.subr.mxu0 0.0
    %921 = vmatpush1.msra.mxu0 %v376
    %922 = vmatprep.subr.mxu0 0.0
    %923 = vmatpush1.msra.mxu0 %v377
    %924 = vmatprep.mubr.f32.mxu0 %v31
    %925 = vmatmul.mubr.f32.gmra.mrb[0].mxu0 %v30
    %v926 = vpop.f32.mrb[0].mxu0
    %v927 = vadd.f32 %v702, %v926
    %v928 = vpop.f32.mrb[0].mxu0
    %929 = vmatprep.mubr.f32.mxu0 %v39
    %930 = vmatmul.mubr.f32.gmra.mrb[0].mxu0 %v38
    %v931 = vpop.f32.mrb[0].mxu0
    %v932 = vadd.f32 %v707, %v931
    %v933 = vpop.f32.mrb[0].mxu0
    %934 = vmatprep.mubr.f32.mxu0 %v47
    %935 = vmatmul.mubr.f32.gmra.mrb[0].mxu0 %v46
    %v936 = vpop.f32.mrb[0].mxu0
    %v937 = vadd.f32 %v712, %v936
    %v938 = vpop.f32.mrb[0].mxu0
    %939 = vmatprep.mubr.f32.mxu0 %v55
    %940 = vmatmul.mubr.f32.gmra.mrb[0].mxu0 %v54
    %v941 = vpop.f32.mrb[0].mxu0
    %v942 = vadd.f32 %v717, %v941
    %v943 = vpop.f32.mrb[0].mxu0
    %944 = vmatprep.mubr.f32.mxu0 %v63
    %945 = vmatmul.mubr.f32.gmra.mrb[0].mxu0 %v62
    %v946 = vpop.f32.mrb[0].mxu0
    %v947 = vadd.f32 %v722, %v946
    %v948 = vpop.f32.mrb[0].mxu0
    %949 = vmatprep.mubr.f32.mxu0 %v71
    %950 = vmatmul.mubr.f32.gmra.mrb[0].mxu0 %v70
    %v951 = vpop.f32.mrb[0].mxu0
    %v952 = vadd.f32 %v727, %v951
    %v953 = vpop.f32.mrb[0].mxu0
    %954 = vmatprep.mubr.f32.mxu0 %v79
    %955 = vmatmul.mubr.f32.gmra.mrb[0].mxu0 %v78
    %v956 = vpop.f32.mrb[0].mxu0
    %v957 = vadd.f32 %v732, %v956
    %v958 = vpop.f32.mrb[0].mxu0
    %959 = vmatprep.mubr.f32.mxu0 %v87
    %960 = vmatmul.mubr.f32.gmra.mrb[0].mxu0 %v86
    %v961 = vpop.f32.mrb[0].mxu0
    %v962 = vadd.f32 %v737, %v961
    %v963 = vpop.f32.mrb[0].mxu0
    %964 = vmatprep.mubr.f32.mxu0 %v95
    %965 = vmatmul.mubr.f32.gmra.mrb[0].mxu0 %v94
    %v966 = vpop.f32.mrb[0].mxu0
    %v967 = vadd.f32 %v742, %v966
    %v968 = vpop.f32.mrb[0].mxu0
    %969 = vmatprep.mubr.f32.mxu0 %v103
    %970 = vmatmul.mubr.f32.gmra.mrb[0].mxu0 %v102
    %v971 = vpop.f32.mrb[0].mxu0
    %v972 = vadd.f32 %v747, %v971
    %v973 = vpop.f32.mrb[0].mxu0
    %974 = vmatprep.mubr.f32.mxu0 %v111
    %975 = vmatmul.mubr.f32.gmra.mrb[0].mxu0 %v110
    %v976 = vpop.f32.mrb[0].mxu0
    %v977 = vadd.f32 %v752, %v976
    %v978 = vpop.f32.mrb[0].mxu0
    %979 = vmatprep.mubr.f32.mxu0 %v119
    %980 = vmatmul.mubr.f32.gmra.mrb[0].mxu0 %v118
    %v981 = vpop.f32.mrb[0].mxu0
    %v982 = vadd.f32 %v757, %v981
    %v983 = vpop.f32.mrb[0].mxu0
    %984 = vmatprep.mubr.f32.mxu0 %v127
    %985 = vmatmul.mubr.f32.gmra.mrb[0].mxu0 %v126
    %v986 = vpop.f32.mrb[0].mxu0
    %v987 = vadd.f32 %v762, %v986
    %v988 = vpop.f32.mrb[0].mxu0
    %989 = vmatprep.mubr.f32.mxu0 %v135
    %990 = vmatmul.mubr.f32.gmra.mrb[0].mxu0 %v134
    %v991 = vpop.f32.mrb[0].mxu0
    %v992 = vadd.f32 %v767, %v991
    %v993 = vpop.f32.mrb[0].mxu0
    %994 = vmatprep.mubr.f32.mxu0 %v143
    %995 = vmatmul.mubr.f32.gmra.mrb[0].mxu0 %v142
    %v996 = vpop.f32.mrb[0].mxu0
    %v997 = vadd.f32 %v772, %v996
    %v998 = vpop.f32.mrb[0].mxu0
    %999 = vmatprep.mubr.f32.mxu0 %v151
    %1000 = vmatmul.mubr.f32.gmra.mrb[0].mxu0 %v150
    %v1001 = vpop.f32.mrb[0].mxu0
    %v1002 = vadd.f32 %v777, %v1001
    %v1003 = vpop.f32.mrb[0].mxu0
    %1004 = vmatprep.mubr.f32.mxu0 %v159
    %1005 = vmatmul.mubr.f32.gmra.mrb[0].mxu0 %v158
    %v1006 = vpop.f32.mrb[0].mxu0
    %v1007 = vadd.f32 %v782, %v1006
    %v1008 = vpop.f32.mrb[0].mxu0
    %1009 = vmatprep.mubr.f32.mxu0 %v167
    %1010 = vmatmul.mubr.f32.gmra.mrb[0].mxu0 %v166
    %v1011 = vpop.f32.mrb[0].mxu0
    %v1012 = vadd.f32 %v787, %v1011
    %v1013 = vpop.f32.mrb[0].mxu0
    %1014 = vmatprep.mubr.f32.mxu0 %v175
    %1015 = vmatmul.mubr.f32.gmra.mrb[0].mxu0 %v174
    %v1016 = vpop.f32.mrb[0].mxu0
    %v1017 = vadd.f32 %v792, %v1016
    %v1018 = vpop.f32.mrb[0].mxu0
    %1019 = vmatprep.mubr.f32.mxu0 %v183
    %1020 = vmatmul.mubr.f32.gmra.mrb[0].mxu0 %v182
    %v1021 = vpop.f32.mrb[0].mxu0
    %v1022 = vadd.f32 %v797, %v1021
    %v1023 = vpop.f32.mrb[0].mxu0
    %1024 = vmatprep.mubr.f32.mxu0 %v191
    %1025 = vmatmul.mubr.f32.gmra.mrb[0].mxu0 %v190
    %v1026 = vpop.f32.mrb[0].mxu0
    %v1027 = vadd.f32 %v802, %v1026
    %v1028 = vpop.f32.mrb[0].mxu0
    %1029 = vmatprep.mubr.f32.mxu0 %v199
    %1030 = vmatmul.mubr.f32.gmra.mrb[0].mxu0 %v198
    %v1031 = vpop.f32.mrb[0].mxu0
    %v1032 = vadd.f32 %v807, %v1031
    %v1033 = vpop.f32.mrb[0].mxu0
    %1034 = vmatprep.mubr.f32.mxu0 %v207
    %1035 = vmatmul.mubr.f32.gmra.mrb[0].mxu0 %v206
    %v1036 = vpop.f32.mrb[0].mxu0
    %v1037 = vadd.f32 %v812, %v1036
    %v1038 = vpop.f32.mrb[0].mxu0
    %1039 = vmatprep.mubr.f32.mxu0 %v215
    %1040 = vmatmul.mubr.f32.gmra.mrb[0].mxu0 %v214
    %v1041 = vpop.f32.mrb[0].mxu0
    %v1042 = vadd.f32 %v817, %v1041
    %v1043 = vpop.f32.mrb[0].mxu0
    %1044 = vmatprep.mubr.f32.mxu0 %v223
    %1045 = vmatmul.mubr.f32.gmra.mrb[0].mxu0 %v222
    %v1046 = vpop.f32.mrb[0].mxu0
    %v1047 = vadd.f32 %v822, %v1046
    %v1048 = vpop.f32.mrb[0].mxu0
    %1049 = vmatprep.mubr.f32.mxu0 %v231
    %1050 = vmatmul.mubr.f32.gmra.mrb[0].mxu0 %v230
    %v1051 = vpop.f32.mrb[0].mxu0
    %v1052 = vadd.f32 %v827, %v1051
    %v1053 = vpop.f32.mrb[0].mxu0
    %1054 = vmatprep.mubr.f32.mxu0 %v239
    %1055 = vmatmul.mubr.f32.gmra.mrb[0].mxu0 %v238
    %v1056 = vpop.f32.mrb[0].mxu0
    %v1057 = vadd.f32 %v832, %v1056
    %v1058 = vpop.f32.mrb[0].mxu0
    %1059 = vmatprep.mubr.f32.mxu0 %v247
    %1060 = vmatmul.mubr.f32.gmra.mrb[0].mxu0 %v246
    %v1061 = vpop.f32.mrb[0].mxu0
    %v1062 = vadd.f32 %v837, %v1061
    %v1063 = vpop.f32.mrb[0].mxu0
    %1064 = vmatprep.mubr.f32.mxu0 %v255
    %1065 = vmatmul.mubr.f32.gmra.mrb[0].mxu0 %v254
    %v1066 = vpop.f32.mrb[0].mxu0
    %v1067 = vadd.f32 %v842, %v1066
    %v1068 = vpop.f32.mrb[0].mxu0
    %1069 = vmatprep.mubr.f32.mxu0 %v263
    %1070 = vmatmul.mubr.f32.gmra.mrb[0].mxu0 %v262
    %v1071 = vpop.f32.mrb[0].mxu0
    %v1072 = vadd.f32 %v847, %v1071
    %v1073 = vpop.f32.mrb[0].mxu0
    %1074 = vmatprep.mubr.f32.mxu0 %v271
    %1075 = vmatmul.mubr.f32.gmra.mrb[0].mxu0 %v270
    %v1076 = vpop.f32.mrb[0].mxu0
    %v1077 = vadd.f32 %v852, %v1076
    %v1078 = vpop.f32.mrb[0].mxu0
    %1079 = vmatprep.mubr.f32.mxu0 %v279
    %1080 = vmatmul.mubr.f32.gmra.mrb[0].mxu0 %v278
    %v1081 = vpop.f32.mrb[0].mxu0
    %v1082 = vadd.f32 %v857, %v1081
    %v1083 = vpop.f32.mrb[0].mxu0
    %1084 = vdwg.mxu0
    %1085 = vmatprep.subr.mxu0 0.0
    %1086 = vmatpush1.msra.mxu0 %v378
    %1087 = vmatprep.subr.mxu0 0.0
    %1088 = vmatpush1.msra.mxu0 %v379
    %1089 = vmatprep.subr.mxu0 0.0
    %1090 = vmatpush1.msra.mxu0 %v380
    %1091 = vmatprep.subr.mxu0 0.0
    %1092 = vmatpush1.msra.mxu0 %v381
    %1093 = vmatprep.subr.mxu0 0.0
    %1094 = vmatpush1.msra.mxu0 %v382
    %1095 = vmatprep.subr.mxu0 0.0
    %1096 = vmatpush1.msra.mxu0 %v383
    %1097 = vmatprep.subr.mxu0 0.0
    %1098 = vmatpush1.msra.mxu0 %v384
    %1099 = vmatprep.subr.mxu0 0.0
    %1100 = vmatpush1.msra.mxu0 %v385
    %1101 = vmatprep.subr.mxu0 0.0
    %1102 = vmatpush1.msra.mxu0 %v386
    %1103 = vmatprep.subr.mxu0 0.0
    %1104 = vmatpush1.msra.mxu0 %v387
    %1105 = vmatprep.subr.mxu0 0.0
    %1106 = vmatpush1.msra.mxu0 %v388
    %1107 = vmatprep.subr.mxu0 0.0
    %1108 = vmatpush1.msra.mxu0 %v389
    %1109 = vmatprep.subr.mxu0 0.0
    %1110 = vmatpush1.msra.mxu0 %v390
    %1111 = vmatprep.subr.mxu0 0.0
    %1112 = vmatpush1.msra.mxu0 %v391
    %1113 = vmatprep.subr.mxu0 0.0
    %1114 = vmatpush1.msra.mxu0 %v392
    %1115 = vmatprep.subr.mxu0 0.0
    %1116 = vmatpush1.msra.mxu0 %v393
    %1117 = vmatprep.subr.mxu0 0.0
    %1118 = vmatpush1.msra.mxu0 %v394
    %1119 = vmatprep.subr.mxu0 0.0
    %1120 = vmatpush1.msra.mxu0 %v395
    %1121 = vmatprep.subr.mxu0 0.0
    %1122 = vmatpush1.msra.mxu0 %v396
    %1123 = vmatprep.subr.mxu0 0.0
    %1124 = vmatpush1.msra.mxu0 %v397
    %1125 = vmatprep.subr.mxu0 0.0
    %1126 = vmatpush1.msra.mxu0 %v398
    %1127 = vmatprep.subr.mxu0 0.0
    %1128 = vmatpush1.msra.mxu0 %v399
    %1129 = vmatprep.subr.mxu0 0.0
    %1130 = vmatpush1.msra.mxu0 %v400
    %1131 = vmatprep.subr.mxu0 0.0
    %1132 = vmatpush1.msra.mxu0 %v401
    %1133 = vmatprep.subr.mxu0 0.0
    %1134 = vmatpush1.msra.mxu0 %v402
    %1135 = vmatprep.subr.mxu0 0.0
    %1136 = vmatpush1.msra.mxu0 %v403
    %1137 = vmatprep.subr.mxu0 0.0
    %1138 = vmatpush1.msra.mxu0 %v404
    %1139 = vmatprep.subr.mxu0 0.0
    %1140 = vmatpush1.msra.mxu0 %v405
    %1141 = vmatprep.subr.mxu0 0.0
    %1142 = vmatpush1.msra.mxu0 %v406
    %1143 = vmatprep.subr.mxu0 0.0
    %1144 = vmatpush1.msra.mxu0 %v407
    %1145 = vmatprep.subr.mxu0 0.0
    %1146 = vmatpush1.msra.mxu0 %v408
    %1147 = vmatprep.subr.mxu0 0.0
    %1148 = vmatpush1.msra.mxu0 %v409
    %1149 = vmatprep.mubr.f32.mxu0 %v33
    %1150 = vmatmul.mubr.f32.gmra.mrb[0].mxu0 %v32
    %v1151 = vpop.f32.mrb[0].mxu0
    %v1152 = vadd.f32 %v927, %v1151
    %v1153 = vpop.f32.mrb[0].mxu0
    %1154 = vmatprep.mubr.f32.mxu0 %v41
    %1155 = vmatmul.mubr.f32.gmra.mrb[0].mxu0 %v40
    %v1156 = vpop.f32.mrb[0].mxu0
    %v1157 = vadd.f32 %v932, %v1156
    %v1158 = vpop.f32.mrb[0].mxu0
    %1159 = vmatprep.mubr.f32.mxu0 %v49
    %1160 = vmatmul.mubr.f32.gmra.mrb[0].mxu0 %v48
    %v1161 = vpop.f32.mrb[0].mxu0
    %v1162 = vadd.f32 %v937, %v1161
    %v1163 = vpop.f32.mrb[0].mxu0
    %1164 = vmatprep.mubr.f32.mxu0 %v57
    %1165 = vmatmul.mubr.f32.gmra.mrb[0].mxu0 %v56
    %v1166 = vpop.f32.mrb[0].mxu0
    %v1167 = vadd.f32 %v942, %v1166
    %v1168 = vpop.f32.mrb[0].mxu0
    %1169 = vmatprep.mubr.f32.mxu0 %v65
    %1170 = vmatmul.mubr.f32.gmra.mrb[0].mxu0 %v64
    %v1171 = vpop.f32.mrb[0].mxu0
    %v1172 = vadd.f32 %v947, %v1171
    %v1173 = vpop.f32.mrb[0].mxu0
    %1174 = vmatprep.mubr.f32.mxu0 %v73
    %1175 = vmatmul.mubr.f32.gmra.mrb[0].mxu0 %v72
    %v1176 = vpop.f32.mrb[0].mxu0
    %v1177 = vadd.f32 %v952, %v1176
    %v1178 = vpop.f32.mrb[0].mxu0
    %1179 = vmatprep.mubr.f32.mxu0 %v81
    %1180 = vmatmul.mubr.f32.gmra.mrb[0].mxu0 %v80
    %v1181 = vpop.f32.mrb[0].mxu0
    %v1182 = vadd.f32 %v957, %v1181
    %v1183 = vpop.f32.mrb[0].mxu0
    %1184 = vmatprep.mubr.f32.mxu0 %v89
    %1185 = vmatmul.mubr.f32.gmra.mrb[0].mxu0 %v88
    %v1186 = vpop.f32.mrb[0].mxu0
    %v1187 = vadd.f32 %v962, %v1186
    %v1188 = vpop.f32.mrb[0].mxu0
    %1189 = vmatprep.mubr.f32.mxu0 %v97
    %1190 = vmatmul.mubr.f32.gmra.mrb[0].mxu0 %v96
    %v1191 = vpop.f32.mrb[0].mxu0
    %v1192 = vadd.f32 %v967, %v1191
    %v1193 = vpop.f32.mrb[0].mxu0
    %1194 = vmatprep.mubr.f32.mxu0 %v105
    %1195 = vmatmul.mubr.f32.gmra.mrb[0].mxu0 %v104
    %v1196 = vpop.f32.mrb[0].mxu0
    %v1197 = vadd.f32 %v972, %v1196
    %v1198 = vpop.f32.mrb[0].mxu0
    %1199 = vmatprep.mubr.f32.mxu0 %v113
    %1200 = vmatmul.mubr.f32.gmra.mrb[0].mxu0 %v112
    %v1201 = vpop.f32.mrb[0].mxu0
    %v1202 = vadd.f32 %v977, %v1201
    %v1203 = vpop.f32.mrb[0].mxu0
    %1204 = vmatprep.mubr.f32.mxu0 %v121
    %1205 = vmatmul.mubr.f32.gmra.mrb[0].mxu0 %v120
    %v1206 = vpop.f32.mrb[0].mxu0
    %v1207 = vadd.f32 %v982, %v1206
    %v1208 = vpop.f32.mrb[0].mxu0
    %1209 = vmatprep.mubr.f32.mxu0 %v129
    %1210 = vmatmul.mubr.f32.gmra.mrb[0].mxu0 %v128
    %v1211 = vpop.f32.mrb[0].mxu0
    %v1212 = vadd.f32 %v987, %v1211
    %v1213 = vpop.f32.mrb[0].mxu0
    %1214 = vmatprep.mubr.f32.mxu0 %v137
    %1215 = vmatmul.mubr.f32.gmra.mrb[0].mxu0 %v136
    %v1216 = vpop.f32.mrb[0].mxu0
    %v1217 = vadd.f32 %v992, %v1216
    %v1218 = vpop.f32.mrb[0].mxu0
    %1219 = vmatprep.mubr.f32.mxu0 %v145
    %1220 = vmatmul.mubr.f32.gmra.mrb[0].mxu0 %v144
    %v1221 = vpop.f32.mrb[0].mxu0
    %v1222 = vadd.f32 %v997, %v1221
    %v1223 = vpop.f32.mrb[0].mxu0
    %1224 = vmatprep.mubr.f32.mxu0 %v153
    %1225 = vmatmul.mubr.f32.gmra.mrb[0].mxu0 %v152
    %v1226 = vpop.f32.mrb[0].mxu0
    %v1227 = vadd.f32 %v1002, %v1226
    %v1228 = vpop.f32.mrb[0].mxu0
    %1229 = vmatprep.mubr.f32.mxu0 %v161
    %1230 = vmatmul.mubr.f32.gmra.mrb[0].mxu0 %v160
    %v1231 = vpop.f32.mrb[0].mxu0
    %v1232 = vadd.f32 %v1007, %v1231
    %v1233 = vpop.f32.mrb[0].mxu0
    %1234 = vmatprep.mubr.f32.mxu0 %v169
    %1235 = vmatmul.mubr.f32.gmra.mrb[0].mxu0 %v168
    %v1236 = vpop.f32.mrb[0].mxu0
    %v1237 = vadd.f32 %v1012, %v1236
    %v1238 = vpop.f32.mrb[0].mxu0
    %1239 = vmatprep.mubr.f32.mxu0 %v177
    %1240 = vmatmul.mubr.f32.gmra.mrb[0].mxu0 %v176
    %v1241 = vpop.f32.mrb[0].mxu0
    %v1242 = vadd.f32 %v1017, %v1241
    %v1243 = vpop.f32.mrb[0].mxu0
    %1244 = vmatprep.mubr.f32.mxu0 %v185
    %1245 = vmatmul.mubr.f32.gmra.mrb[0].mxu0 %v184
    %v1246 = vpop.f32.mrb[0].mxu0
    %v1247 = vadd.f32 %v1022, %v1246
    %v1248 = vpop.f32.mrb[0].mxu0
    %1249 = vmatprep.mubr.f32.mxu0 %v193
    %1250 = vmatmul.mubr.f32.gmra.mrb[0].mxu0 %v192
    %v1251 = vpop.f32.mrb[0].mxu0
    %v1252 = vadd.f32 %v1027, %v1251
    %v1253 = vpop.f32.mrb[0].mxu0
    %1254 = vmatprep.mubr.f32.mxu0 %v201
    %1255 = vmatmul.mubr.f32.gmra.mrb[0].mxu0 %v200
    %v1256 = vpop.f32.mrb[0].mxu0
    %v1257 = vadd.f32 %v1032, %v1256
    %v1258 = vpop.f32.mrb[0].mxu0
    %1259 = vmatprep.mubr.f32.mxu0 %v209
    %1260 = vmatmul.mubr.f32.gmra.mrb[0].mxu0 %v208
    %v1261 = vpop.f32.mrb[0].mxu0
    %v1262 = vadd.f32 %v1037, %v1261
    %v1263 = vpop.f32.mrb[0].mxu0
    %1264 = vmatprep.mubr.f32.mxu0 %v217
    %1265 = vmatmul.mubr.f32.gmra.mrb[0].mxu0 %v216
    %v1266 = vpop.f32.mrb[0].mxu0
    %v1267 = vadd.f32 %v1042, %v1266
    %v1268 = vpop.f32.mrb[0].mxu0
    %1269 = vmatprep.mubr.f32.mxu0 %v225
    %1270 = vmatmul.mubr.f32.gmra.mrb[0].mxu0 %v224
    %v1271 = vpop.f32.mrb[0].mxu0
    %v1272 = vadd.f32 %v1047, %v1271
    %v1273 = vpop.f32.mrb[0].mxu0
    %1274 = vmatprep.mubr.f32.mxu0 %v233
    %1275 = vmatmul.mubr.f32.gmra.mrb[0].mxu0 %v232
    %v1276 = vpop.f32.mrb[0].mxu0
    %v1277 = vadd.f32 %v1052, %v1276
    %v1278 = vpop.f32.mrb[0].mxu0
    %1279 = vmatprep.mubr.f32.mxu0 %v241
    %1280 = vmatmul.mubr.f32.gmra.mrb[0].mxu0 %v240
    %v1281 = vpop.f32.mrb[0].mxu0
    %v1282 = vadd.f32 %v1057, %v1281
    %v1283 = vpop.f32.mrb[0].mxu0
    %1284 = vmatprep.mubr.f32.mxu0 %v249
    %1285 = vmatmul.mubr.f32.gmra.mrb[0].mxu0 %v248
    %v1286 = vpop.f32.mrb[0].mxu0
    %v1287 = vadd.f32 %v1062, %v1286
    %v1288 = vpop.f32.mrb[0].mxu0
    %1289 = vmatprep.mubr.f32.mxu0 %v257
    %1290 = vmatmul.mubr.f32.gmra.mrb[0].mxu0 %v256
    %v1291 = vpop.f32.mrb[0].mxu0
    %v1292 = vadd.f32 %v1067, %v1291
    %v1293 = vpop.f32.mrb[0].mxu0
    %1294 = vmatprep.mubr.f32.mxu0 %v265
    %1295 = vmatmul.mubr.f32.gmra.mrb[0].mxu0 %v264
    %v1296 = vpop.f32.mrb[0].mxu0
    %v1297 = vadd.f32 %v1072, %v1296
    %v1298 = vpop.f32.mrb[0].mxu0
    %1299 = vmatprep.mubr.f32.mxu0 %v273
    %1300 = vmatmul.mubr.f32.gmra.mrb[0].mxu0 %v272
    %v1301 = vpop.f32.mrb[0].mxu0
    %v1302 = vadd.f32 %v1077, %v1301
    %v1303 = vpop.f32.mrb[0].mxu0
    %1304 = vmatprep.mubr.f32.mxu0 %v281
    %1305 = vmatmul.mubr.f32.gmra.mrb[0].mxu0 %v280
    %v1306 = vpop.f32.mrb[0].mxu0
    %v1307 = vadd.f32 %v1082, %v1306
    %v1308 = vpop.f32.mrb[0].mxu0
    %1309 = vdwg.mxu0
    %v1310 = vsub.f32 %v1152, %v1232
    %v1311 = vsub.f32 %v1157, %v1237
    %v1312 = vsub.f32 %v1162, %v1242
    %v1313 = vsub.f32 %v1167, %v1247
    %v1314 = vsub.f32 %v1172, %v1252
    %v1315 = vsub.f32 %v1177, %v1257
    %v1316 = vsub.f32 %v1182, %v1262
    %v1317 = vsub.f32 %v1187, %v1267
    %v1318 = vsub.f32 %v1192, %v1272
    %v1319 = vsub.f32 %v1197, %v1277
    %v1320 = vsub.f32 %v1202, %v1282
    %v1321 = vsub.f32 %v1207, %v1287
    %v1322 = vsub.f32 %v1212, %v1292
    %v1323 = vsub.f32 %v1217, %v1297
    %v1324 = vsub.f32 %v1222, %v1302
    %v1325 = vsub.f32 %v1227, %v1307
    %v1326 = vmul.f32 %v1310, %v1310
    %v1327 = vmul.f32 %v1311, %v1311
    %v1328 = vmul.f32 %v1312, %v1312
    %v1329 = vmul.f32 %v1313, %v1313
    %v1330 = vmul.f32 %v1314, %v1314
    %v1331 = vmul.f32 %v1315, %v1315
    %v1332 = vmul.f32 %v1316, %v1316
    %v1333 = vmul.f32 %v1317, %v1317
    %v1334 = vmul.f32 %v1318, %v1318
    %v1335 = vmul.f32 %v1319, %v1319
    %v1336 = vmul.f32 %v1320, %v1320
    %v1337 = vmul.f32 %v1321, %v1321
    %v1338 = vmul.f32 %v1322, %v1322
    %v1339 = vmul.f32 %v1323, %v1323
    %v1340 = vmul.f32 %v1324, %v1324
    %v1341 = vmul.f32 %v1325, %v1325
    %vm1342 = vcmask 261120
    %v1343 = vsel %vm1342, %v1326, 0.0
    %v1344 = vsel %vm1342, %v1327, 0.0
    %v1345 = vadd.f32 %v1343, %v1344
    %v1346 = vsel %vm1342, %v1328, 0.0
    %v1347 = vadd.f32 %v1345, %v1346
    %v1348 = vsel %vm1342, %v1329, 0.0
    %v1349 = vadd.f32 %v1347, %v1348
    %v1350 = vsel %vm1342, %v1330, 0.0
    %v1351 = vadd.f32 %v1349, %v1350
    %v1352 = vsel %vm1342, %v1331, 0.0
    %v1353 = vadd.f32 %v1351, %v1352
    %v1354 = vsel %vm1342, %v1332, 0.0
    %v1355 = vadd.f32 %v1353, %v1354
    %v1356 = vsel %vm1342, %v1333, 0.0
    %v1357 = vadd.f32 %v1355, %v1356
    %v1358 = vsel %vm1342, %v1334, 0.0
    %v1359 = vadd.f32 %v1357, %v1358
    %v1360 = vsel %vm1342, %v1335, 0.0
    %v1361 = vadd.f32 %v1359, %v1360
    %v1362 = vsel %vm1342, %v1336, 0.0
    %v1363 = vadd.f32 %v1361, %v1362
    %v1364 = vsel %vm1342, %v1337, 0.0
    %v1365 = vadd.f32 %v1363, %v1364
    %v1366 = vsel %vm1342, %v1338, 0.0
    %v1367 = vadd.f32 %v1365, %v1366
    %v1368 = vsel %vm1342, %v1339, 0.0
    %v1369 = vadd.f32 %v1367, %v1368
    %v1370 = vsel %vm1342, %v1340, 0.0
    %v1371 = vadd.f32 %v1369, %v1370
    %v1372 = vsel %vm1342, %v1341, 0.0
    %v1373 = vadd.f32 %v1371, %v1372
    %1374 = vadd.xlane.f32.xlu0 %v1373
    %v1375 = vpop.xlane.xlu0 %1374
    %v1376 = vrot.slane %v1375, 4
    %v1377 = vadd.f32 %v1375, %v1376
    %v1378 = vrot.slane %v1377, 2
    %v1379 = vadd.f32 %v1377, %v1378
    %v1380 = vrot.slane %v1379, 1
    %v1381 = vadd.f32 %v1379, %v1380
    %s1382 = vtos %v1381
    %s1383 = smul.f32 %s1382, 0.00024414063
    %v1384 = vsel %vm1342, %v1152, 0.0
    %v1385 = vsel %vm1342, %v1157, 0.0
    %v1386 = vadd.f32 %v1384, %v1385
    %v1387 = vsel %vm1342, %v1162, 0.0
    %v1388 = vadd.f32 %v1386, %v1387
    %v1389 = vsel %vm1342, %v1167, 0.0
    %v1390 = vadd.f32 %v1388, %v1389
    %v1391 = vsel %vm1342, %v1172, 0.0
    %v1392 = vadd.f32 %v1390, %v1391
    %v1393 = vsel %vm1342, %v1177, 0.0
    %v1394 = vadd.f32 %v1392, %v1393
    %v1395 = vsel %vm1342, %v1182, 0.0
    %v1396 = vadd.f32 %v1394, %v1395
    %v1397 = vsel %vm1342, %v1187, 0.0
    %v1398 = vadd.f32 %v1396, %v1397
    %v1399 = vsel %vm1342, %v1192, 0.0
    %v1400 = vadd.f32 %v1398, %v1399
    %v1401 = vsel %vm1342, %v1197, 0.0
    %v1402 = vadd.f32 %v1400, %v1401
    %v1403 = vsel %vm1342, %v1202, 0.0
    %v1404 = vadd.f32 %v1402, %v1403
    %v1405 = vsel %vm1342, %v1207, 0.0
    %v1406 = vadd.f32 %v1404, %v1405
    %v1407 = vsel %vm1342, %v1212, 0.0
    %v1408 = vadd.f32 %v1406, %v1407
    %v1409 = vsel %vm1342, %v1217, 0.0
    %v1410 = vadd.f32 %v1408, %v1409
    %v1411 = vsel %vm1342, %v1222, 0.0
    %v1412 = vadd.f32 %v1410, %v1411
    %v1413 = vsel %vm1342, %v1227, 0.0
    %v1414 = vadd.f32 %v1412, %v1413
    %v1415 = vrot.slane %v1414, 4
    %v1416 = vadd.f32 %v1414, %v1415
    %v1417 = vrot.slane %v1416, 2
    %v1418 = vadd.f32 %v1416, %v1417
    %v1419 = vrot.slane %v1418, 1
    %v1420 = vadd.f32 %v1418, %v1419
    %v1421 = vrcp.pop 128.0
    %v1422 = vmul.f32 %v1420, %v1421
    %v1423 = vsub.f32 %v1152, %v1422
    %v1424 = vsub.f32 %v1157, %v1422
    %v1425 = vsub.f32 %v1162, %v1422
    %v1426 = vsub.f32 %v1167, %v1422
    %v1427 = vsub.f32 %v1172, %v1422
    %v1428 = vsub.f32 %v1177, %v1422
    %v1429 = vsub.f32 %v1182, %v1422
    %v1430 = vsub.f32 %v1187, %v1422
    %v1431 = vsub.f32 %v1192, %v1422
    %v1432 = vsub.f32 %v1197, %v1422
    %v1433 = vsub.f32 %v1202, %v1422
    %v1434 = vsub.f32 %v1207, %v1422
    %v1435 = vsub.f32 %v1212, %v1422
    %v1436 = vsub.f32 %v1217, %v1422
    %v1437 = vsub.f32 %v1222, %v1422
    %v1438 = vsub.f32 %v1227, %v1422
    %v1439 = vsel %vm1342, %v1232, 0.0
    %v1440 = vsel %vm1342, %v1237, 0.0
    %v1441 = vadd.f32 %v1439, %v1440
    %v1442 = vsel %vm1342, %v1242, 0.0
    %v1443 = vadd.f32 %v1441, %v1442
    %v1444 = vsel %vm1342, %v1247, 0.0
    %v1445 = vadd.f32 %v1443, %v1444
    %v1446 = vsel %vm1342, %v1252, 0.0
    %v1447 = vadd.f32 %v1445, %v1446
    %v1448 = vsel %vm1342, %v1257, 0.0
    %v1449 = vadd.f32 %v1447, %v1448
    %v1450 = vsel %vm1342, %v1262, 0.0
    %v1451 = vadd.f32 %v1449, %v1450
    %v1452 = vsel %vm1342, %v1267, 0.0
    %v1453 = vadd.f32 %v1451, %v1452
    %v1454 = vsel %vm1342, %v1272, 0.0
    %v1455 = vadd.f32 %v1453, %v1454
    %v1456 = vsel %vm1342, %v1277, 0.0
    %v1457 = vadd.f32 %v1455, %v1456
    %v1458 = vsel %vm1342, %v1282, 0.0
    %v1459 = vadd.f32 %v1457, %v1458
    %v1460 = vsel %vm1342, %v1287, 0.0
    %v1461 = vadd.f32 %v1459, %v1460
    %v1462 = vsel %vm1342, %v1292, 0.0
    %v1463 = vadd.f32 %v1461, %v1462
    %v1464 = vsel %vm1342, %v1297, 0.0
    %v1465 = vadd.f32 %v1463, %v1464
    %v1466 = vsel %vm1342, %v1302, 0.0
    %v1467 = vadd.f32 %v1465, %v1466
    %v1468 = vsel %vm1342, %v1307, 0.0
    %v1469 = vadd.f32 %v1467, %v1468
    %v1470 = vrot.slane %v1469, 4
    %v1471 = vadd.f32 %v1469, %v1470
    %v1472 = vrot.slane %v1471, 2
    %v1473 = vadd.f32 %v1471, %v1472
    %v1474 = vrot.slane %v1473, 1
    %v1475 = vadd.f32 %v1473, %v1474
    %v1476 = vmul.f32 %v1475, %v1421
    %v1477 = vsub.f32 %v1232, %v1476
    %v1478 = vsub.f32 %v1237, %v1476
    %v1479 = vsub.f32 %v1242, %v1476
    %v1480 = vsub.f32 %v1247, %v1476
    %v1481 = vsub.f32 %v1252, %v1476
    %v1482 = vsub.f32 %v1257, %v1476
    %v1483 = vsub.f32 %v1262, %v1476
    %v1484 = vsub.f32 %v1267, %v1476
    %v1485 = vsub.f32 %v1272, %v1476
    %v1486 = vsub.f32 %v1277, %v1476
    %v1487 = vsub.f32 %v1282, %v1476
    %v1488 = vsub.f32 %v1287, %v1476
    %v1489 = vsub.f32 %v1292, %v1476
    %v1490 = vsub.f32 %v1297, %v1476
    %v1491 = vsub.f32 %v1302, %v1476
    %v1492 = vsub.f32 %v1307, %v1476
    %1509 = vrot.lane.b32.xlu0 %v1477, 32
    %v1510 = vpop.permute.xlu0 %1509
    %1511 = vrot.lane.b32.xlu0 %v1478, 32
    %v1512 = vpop.permute.xlu0 %1511
    %1513 = vrot.lane.b32.xlu0 %v1479, 32
    %v1514 = vpop.permute.xlu0 %1513
    %1515 = vrot.lane.b32.xlu0 %v1480, 32
    %v1516 = vpop.permute.xlu0 %1515
    %1517 = vrot.lane.b32.xlu0 %v1481, 32
    %v1518 = vpop.permute.xlu0 %1517
    %1519 = vrot.lane.b32.xlu0 %v1482, 32
    %v1520 = vpop.permute.xlu0 %1519
    %1521 = vrot.lane.b32.xlu0 %v1483, 32
    %v1522 = vpop.permute.xlu0 %1521
    %1523 = vrot.lane.b32.xlu0 %v1484, 32
    %v1524 = vpop.permute.xlu0 %1523
    %1525 = vrot.lane.b32.xlu0 %v1485, 32
    %v1526 = vpop.permute.xlu0 %1525
    %1527 = vrot.lane.b32.xlu0 %v1486, 32
    %v1528 = vpop.permute.xlu0 %1527
    %1529 = vrot.lane.b32.xlu0 %v1487, 32
    %v1530 = vpop.permute.xlu0 %1529
    %1531 = vrot.lane.b32.xlu0 %v1488, 32
    %v1532 = vpop.permute.xlu0 %1531
    %1533 = vrot.lane.b32.xlu0 %v1489, 32
    %v1534 = vpop.permute.xlu0 %1533
    %1535 = vrot.lane.b32.xlu0 %v1490, 32
    %v1536 = vpop.permute.xlu0 %1535
    %1537 = vrot.lane.b32.xlu0 %v1491, 32
    %v1538 = vpop.permute.xlu0 %1537
    %1539 = vrot.lane.b32.xlu0 %v1492, 32
    %v1540 = vpop.permute.xlu0 %1539
    %v1557 = vsel %vm1342, %v1423, %v1510
    %v1558 = vsel %vm1342, %v1424, %v1512
    %v1559 = vsel %vm1342, %v1425, %v1514
    %v1560 = vsel %vm1342, %v1426, %v1516
    %v1561 = vsel %vm1342, %v1427, %v1518
    %v1562 = vsel %vm1342, %v1428, %v1520
    %v1563 = vsel %vm1342, %v1429, %v1522
    %v1564 = vsel %vm1342, %v1430, %v1524
    %v1565 = vsel %vm1342, %v1431, %v1526
    %v1566 = vsel %vm1342, %v1432, %v1528
    %v1567 = vsel %vm1342, %v1433, %v1530
    %v1568 = vsel %vm1342, %v1434, %v1532
    %v1569 = vsel %vm1342, %v1435, %v1534
    %v1570 = vsel %vm1342, %v1436, %v1536
    %v1571 = vsel %vm1342, %v1437, %v1538
    %v1572 = vsel %vm1342, %v1438, %v1540
    %1573 = vxpose.xlu0.b32.start [1/16] %v1557, 128
    %1574 = vxpose.xlu0.b32.cont [2/16] %v1558, 128
    %1575 = vxpose.xlu0.b32.cont [3/16] %v1559, 128
    %1576 = vxpose.xlu0.b32.cont [4/16] %v1560, 128
    %1577 = vxpose.xlu0.b32.cont [5/16] %v1561, 128
    %1578 = vxpose.xlu0.b32.cont [6/16] %v1562, 128
    %1579 = vxpose.xlu0.b32.cont [7/16] %v1563, 128
    %1580 = vxpose.xlu0.b32.cont [8/16] %v1564, 128
    %1581 = vxpose.xlu0.b32.cont [9/16] %v1565, 128
    %1582 = vxpose.xlu0.b32.cont [10/16] %v1566, 128
    %1583 = vxpose.xlu0.b32.cont [11/16] %v1567, 128
    %1584 = vxpose.xlu0.b32.cont [12/16] %v1568, 128
    %1585 = vxpose.xlu0.b32.cont [13/16] %v1569, 128
    %1586 = vxpose.xlu0.b32.cont [14/16] %v1570, 128
    %1587 = vxpose.xlu0.b32.cont [15/16] %v1571, 128
    %1588 = vxpose.xlu0.b32.end [16/16] %v1572, 128
    %v1589 = vpop.trf.xlu0
    %v1590 = vpop.trf.xlu0
    %v1591 = vpop.trf.xlu0
    %v1592 = vpop.trf.xlu0
    %v1593 = vpop.trf.xlu0
    %v1594 = vpop.trf.xlu0
    %v1595 = vpop.trf.xlu0
    %v1596 = vpop.trf.xlu0
    %v1597 = vpop.trf.xlu0
    %v1598 = vpop.trf.xlu0
    %v1599 = vpop.trf.xlu0
    %v1600 = vpop.trf.xlu0
    %v1601 = vpop.trf.xlu0
    %v1602 = vpop.trf.xlu0
    %v1603 = vpop.trf.xlu0
    %v1604 = vpop.trf.xlu0
    %1605 = vmatprep.subr.mxu0 0.0
    %1606 = vmatpush1.msra.mxu0 %v1557
    %1607 = vmatprep.subr.mxu0 0.0
    %1608 = vmatpush1.msra.mxu0 %v1558
    %1609 = vmatprep.subr.mxu0 0.0
    %1610 = vmatpush1.msra.mxu0 %v1559
    %1611 = vmatprep.subr.mxu0 0.0
    %1612 = vmatpush1.msra.mxu0 %v1560
    %1613 = vmatprep.subr.mxu0 0.0
    %1614 = vmatpush1.msra.mxu0 %v1561
    %1615 = vmatprep.subr.mxu0 0.0
    %1616 = vmatpush1.msra.mxu0 %v1562
    %1617 = vmatprep.subr.mxu0 0.0
    %1618 = vmatpush1.msra.mxu0 %v1563
    %1619 = vmatprep.subr.mxu0 0.0
    %1620 = vmatpush1.msra.mxu0 %v1564
    %1621 = vmatprep.subr.mxu0 0.0
    %1622 = vmatpush1.msra.mxu0 %v1565
    %1623 = vmatprep.subr.mxu0 0.0
    %1624 = vmatpush1.msra.mxu0 %v1566
    %1625 = vmatprep.subr.mxu0 0.0
    %1626 = vmatpush1.msra.mxu0 %v1567
    %1627 = vmatprep.subr.mxu0 0.0
    %1628 = vmatpush1.msra.mxu0 %v1568
    %1629 = vmatprep.subr.mxu0 0.0
    %1630 = vmatpush1.msra.mxu0 %v1569
    %1631 = vmatprep.subr.mxu0 0.0
    %1632 = vmatpush1.msra.mxu0 %v1570
    %1633 = vmatprep.subr.mxu0 0.0
    %1634 = vmatpush1.msra.mxu0 %v1571
    %1635 = vmatprep.subr.mxu0 0.0
    %1636 = vmatpush1.msra.mxu0 %v1572
    %1637 = vmatprep.subr.mxu0 0.0
    %1638 = vmatpush1.msra.mxu0 0.0
    %1639 = vmatprep.subr.mxu0 0.0
    %1640 = vmatpush1.msra.mxu0 0.0
    %1641 = vmatprep.subr.mxu0 0.0
    %1642 = vmatpush1.msra.mxu0 0.0
    %1643 = vmatprep.subr.mxu0 0.0
    %1644 = vmatpush1.msra.mxu0 0.0
    %1645 = vmatprep.subr.mxu0 0.0
    %1646 = vmatpush1.msra.mxu0 0.0
    %1647 = vmatprep.subr.mxu0 0.0
    %1648 = vmatpush1.msra.mxu0 0.0
    %1649 = vmatprep.subr.mxu0 0.0
    %1650 = vmatpush1.msra.mxu0 0.0
    %1651 = vmatprep.subr.mxu0 0.0
    %1652 = vmatpush1.msra.mxu0 0.0
    %1653 = vmatprep.subr.mxu0 0.0
    %1654 = vmatpush1.msra.mxu0 0.0
    %1655 = vmatprep.subr.mxu0 0.0
    %1656 = vmatpush1.msra.mxu0 0.0
    %1657 = vmatprep.subr.mxu0 0.0
    %1658 = vmatpush1.msra.mxu0 0.0
    %1659 = vmatprep.subr.mxu0 0.0
    %1660 = vmatpush1.msra.mxu0 0.0
    %1661 = vmatprep.subr.mxu0 0.0
    %1662 = vmatpush1.msra.mxu0 0.0
    %1663 = vmatprep.subr.mxu0 0.0
    %1664 = vmatpush1.msra.mxu0 0.0
    %1665 = vmatprep.subr.mxu0 0.0
    %1666 = vmatpush1.msra.mxu0 0.0
    %1667 = vmatprep.subr.mxu0 0.0
    %1668 = vmatpush1.msra.mxu0 0.0
    %1669 = vmatprep.mubr.f32.mxu0 0.0
    %1670 = vmatmul.mubr.f32.gmra.mrb[0].mxu0 %v1589
    %v1671 = vpop.f32.mrb[0].mxu0
    %v1672 = vadd.f32 0.0, %v1671
    %v1673 = vpop.f32.mrb[0].mxu0
    %1674 = vmatprep.mubr.f32.mxu0 0.0
    %1675 = vmatmul.mubr.f32.gmra.mrb[0].mxu0 %v1590
    %v1676 = vpop.f32.mrb[0].mxu0
    %v1677 = vadd.f32 0.0, %v1676
    %v1678 = vpop.f32.mrb[0].mxu0
    %1679 = vmatprep.mubr.f32.mxu0 0.0
    %1680 = vmatmul.mubr.f32.gmra.mrb[0].mxu0 %v1591
    %v1681 = vpop.f32.mrb[0].mxu0
    %v1682 = vadd.f32 0.0, %v1681
    %v1683 = vpop.f32.mrb[0].mxu0
    %1684 = vmatprep.mubr.f32.mxu0 0.0
    %1685 = vmatmul.mubr.f32.gmra.mrb[0].mxu0 %v1592
    %v1686 = vpop.f32.mrb[0].mxu0
    %v1687 = vadd.f32 0.0, %v1686
    %v1688 = vpop.f32.mrb[0].mxu0
    %1689 = vmatprep.mubr.f32.mxu0 0.0
    %1690 = vmatmul.mubr.f32.gmra.mrb[0].mxu0 %v1593
    %v1691 = vpop.f32.mrb[0].mxu0
    %v1692 = vadd.f32 0.0, %v1691
    %v1693 = vpop.f32.mrb[0].mxu0
    %1694 = vmatprep.mubr.f32.mxu0 0.0
    %1695 = vmatmul.mubr.f32.gmra.mrb[0].mxu0 %v1594
    %v1696 = vpop.f32.mrb[0].mxu0
    %v1697 = vadd.f32 0.0, %v1696
    %v1698 = vpop.f32.mrb[0].mxu0
    %1699 = vmatprep.mubr.f32.mxu0 0.0
    %1700 = vmatmul.mubr.f32.gmra.mrb[0].mxu0 %v1595
    %v1701 = vpop.f32.mrb[0].mxu0
    %v1702 = vadd.f32 0.0, %v1701
    %v1703 = vpop.f32.mrb[0].mxu0
    %1704 = vmatprep.mubr.f32.mxu0 0.0
    %1705 = vmatmul.mubr.f32.gmra.mrb[0].mxu0 %v1596
    %v1706 = vpop.f32.mrb[0].mxu0
    %v1707 = vadd.f32 0.0, %v1706
    %v1708 = vpop.f32.mrb[0].mxu0
    %1709 = vdwg.mxu0
    %v1710 = vmul.f32 %v1672, 0.007874016
    %v1711 = vmul.f32 %v1677, 0.007874016
    %v1712 = vmul.f32 %v1682, 0.007874016
    %v1713 = vmul.f32 %v1687, 0.007874016
    %v1714 = vmul.f32 %v1692, 0.007874016
    %v1715 = vmul.f32 %v1697, 0.007874016
    %v1716 = vmul.f32 %v1702, 0.007874016
    %v1717 = vmul.f32 %v1707, 0.007874016
    %v1718 = vlaneseq
    %v1719 = vshrl.u32 %v1718, 7
    %v1720 = vadd.s32 %v1719, 8
    %v1721 = vadd.s32 %v1719, 16
    %v1722 = vadd.s32 %v1719, 24
    %v1723 = vadd.s32 %v1719, 32
    %v1724 = vadd.s32 %v1719, 40
    %v1725 = vadd.s32 %v1719, 48
    %v1726 = vadd.s32 %v1719, 56
    %v1727 = vlaneseq
    %v1728 = vand.u32 %v1727, 127
    %vm1729 = vcmp.eq.s32.totalorder %v1719, %v1728
    %vm1730 = vcmp.eq.s32.totalorder %v1720, %v1728
    %vm1731 = vcmp.eq.s32.totalorder %v1721, %v1728
    %vm1732 = vcmp.eq.s32.totalorder %v1722, %v1728
    %vm1733 = vcmp.eq.s32.totalorder %v1723, %v1728
    %vm1734 = vcmp.eq.s32.totalorder %v1724, %v1728
    %vm1735 = vcmp.eq.s32.totalorder %v1725, %v1728
    %vm1736 = vcmp.eq.s32.totalorder %v1726, %v1728
    %vm1737 = vcmp.lt.s32.totalorder %v1719, 32
    %vm1738 = vcmp.lt.s32.totalorder %v1720, 32
    %vm1739 = vcmp.lt.s32.totalorder %v1721, 32
    %vm1740 = vcmp.lt.s32.totalorder %v1722, 32
    %vm1741 = vcmp.lt.s32.totalorder %v1723, 32
    %vm1742 = vcmp.lt.s32.totalorder %v1724, 32
    %vm1743 = vcmp.lt.s32.totalorder %v1725, 32
    %vm1744 = vcmp.lt.s32.totalorder %v1726, 32
    %vm1745 = vcmp.lt.s32.totalorder %v1728, 32
    %vm1746 = vmxor %vm1737, %vm1745
    %vm1747 = vmxor %vm1738, %vm1745
    %vm1748 = vmxor %vm1739, %vm1745
    %vm1749 = vmxor %vm1740, %vm1745
    %vm1750 = vmxor %vm1741, %vm1745
    %vm1751 = vmxor %vm1742, %vm1745
    %vm1752 = vmxor %vm1743, %vm1745
    %vm1753 = vmxor %vm1744, %vm1745
    %vm1754 = vmxor %vm1746, 1
    %vm1755 = vmxor %vm1747, 1
    %vm1756 = vmxor %vm1748, 1
    %vm1757 = vmxor %vm1749, 1
    %vm1758 = vmxor %vm1750, 1
    %vm1759 = vmxor %vm1751, 1
    %vm1760 = vmxor %vm1752, 1
    %vm1761 = vmxor %vm1753, 1
    %v1762 = vsel %vm1729, %v1710, 0.0
    %v1763 = vsel %vm1730, %v1711, 0.0
    %v1764 = vsel %vm1731, %v1712, 0.0
    %v1765 = vsel %vm1732, %v1713, 0.0
    %v1766 = vsel %vm1733, %v1714, 0.0
    %v1767 = vsel %vm1734, %v1715, 0.0
    %v1768 = vsel %vm1735, %v1716, 0.0
    %v1769 = vsel %vm1736, %v1717, 0.0
    %vm1770 = vcmask 523264
    %v1771 = vsel %vm1770, %v1762, 0.0
    %v1772 = vsel %vm1770, %v1763, 0.0
    %v1773 = vadd.f32 %v1771, %v1772
    %v1774 = vsel %vm1770, %v1764, 0.0
    %v1775 = vadd.f32 %v1773, %v1774
    %v1776 = vsel %vm1770, %v1765, 0.0
    %v1777 = vadd.f32 %v1775, %v1776
    %v1778 = vsel %vm1770, %v1766, 0.0
    %v1779 = vadd.f32 %v1777, %v1778
    %v1780 = vsel %vm1770, %v1767, 0.0
    %v1781 = vadd.f32 %v1779, %v1780
    %v1782 = vsel %vm1770, %v1768, 0.0
    %v1783 = vadd.f32 %v1781, %v1782
    %v1784 = vsel %vm1770, %v1769, 0.0
    %v1785 = vadd.f32 %v1783, %v1784
    %v1786 = vrot.slane %v1785, 4
    %v1787 = vadd.f32 %v1785, %v1786
    %v1788 = vrot.slane %v1787, 2
    %v1789 = vadd.f32 %v1787, %v1788
    %v1790 = vrot.slane %v1789, 1
    %v1791 = vadd.f32 %v1789, %v1790
    %v1792 = vadd.f32 %v1791, 0.0001
    %v1793 = vrsqrt.pop %v1792
    %v1794 = vmul.f32 %v1792, %v1793
    %vm1795 = vcmp.eq.f32.partialorder %v1792, inf
    %v1796 = vsel %vm1795, %v1792, %v1794
    %vm1797 = vcmp.eq.f32.partialorder %v1792, 0.0
    %v1798 = vand.u32 %v1792, 2147483648
    %v1799 = vsel %vm1797, %v1798, %v1796
    %v1800 = vsub.f32 1.0, %v1799
    %v1801 = vmax.f32 %v1800, 0.0
    %vm1802 = vcmask 516096
    %v1803 = vsel %vm1802, %v1801, 0.0
    %1804 = vadd.xlane.f32.xlu0 %v1803
    %v1805 = vpop.xlane.xlu0 %1804
    %v1806 = vrot.slane %v1805, 4
    %v1807 = vadd.f32 %v1805, %v1806
    %v1808 = vrot.slane %v1807, 2
    %v1809 = vadd.f32 %v1807, %v1808
    %v1810 = vrot.slane %v1809, 1
    %v1811 = vadd.f32 %v1809, %v1810
    %s1812 = vtos %v1811
    %v1813 = vrcp.pop 64.0
    %s1814 = vtos %v1813
    %s1815 = smul.f32 %s1812, %s1814
    %v1816 = vsel %vm1754, %v1710, 0.0
    %v1817 = vsel %vm1755, %v1711, 0.0
    %v1818 = vsel %vm1756, %v1712, 0.0
    %v1819 = vsel %vm1757, %v1713, 0.0
    %v1820 = vsel %vm1758, %v1714, 0.0
    %v1821 = vsel %vm1759, %v1715, 0.0
    %v1822 = vsel %vm1760, %v1716, 0.0
    %v1823 = vsel %vm1761, %v1717, 0.0
    %v1824 = vmul.f32 %v1816, %v1816
    %v1825 = vmul.f32 %v1817, %v1817
    %v1826 = vmul.f32 %v1818, %v1818
    %v1827 = vmul.f32 %v1819, %v1819
    %v1828 = vmul.f32 %v1820, %v1820
    %v1829 = vmul.f32 %v1821, %v1821
    %v1830 = vmul.f32 %v1822, %v1822
    %v1831 = vmul.f32 %v1823, %v1823
    %v1832 = vsel %vm1770, %v1824, 0.0
    %v1833 = vsel %vm1770, %v1825, 0.0
    %v1834 = vadd.f32 %v1832, %v1833
    %v1835 = vsel %vm1770, %v1826, 0.0
    %v1836 = vadd.f32 %v1834, %v1835
    %v1837 = vsel %vm1770, %v1827, 0.0
    %v1838 = vadd.f32 %v1836, %v1837
    %v1839 = vsel %vm1770, %v1828, 0.0
    %v1840 = vadd.f32 %v1838, %v1839
    %v1841 = vsel %vm1770, %v1829, 0.0
    %v1842 = vadd.f32 %v1840, %v1841
    %v1843 = vsel %vm1770, %v1830, 0.0
    %v1844 = vadd.f32 %v1842, %v1843
    %v1845 = vsel %vm1770, %v1831, 0.0
    %v1846 = vadd.f32 %v1844, %v1845
    %1847 = vadd.xlane.f32.xlu0 %v1846
    %v1848 = vpop.xlane.xlu0 %1847
    %v1849 = vrot.slane %v1848, 4
    %v1850 = vadd.f32 %v1848, %v1849
    %v1851 = vrot.slane %v1850, 2
    %v1852 = vadd.f32 %v1850, %v1851
    %v1853 = vrot.slane %v1852, 1
    %v1854 = vadd.f32 %v1852, %v1853
    %s1855 = vtos %v1854
    %v1856 = vmul.f32 %v1762, %v1762
    %v1857 = vmul.f32 %v1763, %v1763
    %v1858 = vmul.f32 %v1764, %v1764
    %v1859 = vmul.f32 %v1765, %v1765
    %v1860 = vmul.f32 %v1766, %v1766
    %v1861 = vmul.f32 %v1767, %v1767
    %v1862 = vmul.f32 %v1768, %v1768
    %v1863 = vmul.f32 %v1769, %v1769
    %v1864 = vsel %vm1770, %v1856, 0.0
    %v1865 = vsel %vm1770, %v1857, 0.0
    %v1866 = vadd.f32 %v1864, %v1865
    %v1867 = vsel %vm1770, %v1858, 0.0
    %v1868 = vadd.f32 %v1866, %v1867
    %v1869 = vsel %vm1770, %v1859, 0.0
    %v1870 = vadd.f32 %v1868, %v1869
    %v1871 = vsel %vm1770, %v1860, 0.0
    %v1872 = vadd.f32 %v1870, %v1871
    %v1873 = vsel %vm1770, %v1861, 0.0
    %v1874 = vadd.f32 %v1872, %v1873
    %v1875 = vsel %vm1770, %v1862, 0.0
    %v1876 = vadd.f32 %v1874, %v1875
    %v1877 = vsel %vm1770, %v1863, 0.0
    %v1878 = vadd.f32 %v1876, %v1877
    %1879 = vadd.xlane.f32.xlu0 %v1878
    %v1880 = vpop.xlane.xlu0 %1879
    %v1881 = vrot.slane %v1880, 4
    %v1882 = vadd.f32 %v1880, %v1881
    %v1883 = vrot.slane %v1882, 2
    %v1884 = vadd.f32 %v1882, %v1883
    %v1885 = vrot.slane %v1884, 1
    %v1886 = vadd.f32 %v1884, %v1885
    %s1887 = vtos %v1886
    %s1888 = ssub.f32 %s1855, %s1887
    %s1889 = smul.f32 %s1888, 0.03125
    %s1890 = smul.f32 %s1383, 25.0
    %s1891 = smul.f32 %s1815, 25.0
    %s1892 = sadd.f32 %s1890, %s1891
    %s1893 = sadd.f32 %s1892, %s1889
    %s1894 = scalar_lea.smem [#allocation5], 0
    %1895 = sst [smem:[%s1894]] %s1893
    // Predicated region
    $region14: #{tpu_custom_call.1} parent=1 // pred_check
      _
    $region15: #{tpu_custom_call.1} parent=1 // pred_check_branch
      %1897 = sbr.rel (0) target = $region17
    $region16: #{tpu_custom_call.1} parent=1 // pred_region
      %s1899 = ssub.s32 16, 16
      %1900 = vsyncadd [#allocation4], %s1899
      %1903 = dma.smem_to_hbm [#allocation5], 16, %s2, [#allocation4]
    $region17: #{tpu_custom_call.1} parent=1 // pred_fallthru
      _
    // Predicated region
    $region18: #{tpu_custom_call.1} parent=1 // pred_check
      _
    $region19: #{tpu_custom_call.1} parent=1 // pred_check_branch
      %1905 = sbr.rel (0) target = $region21
    $region20: #{tpu_custom_call.1} parent=1 // pred_region
      %1906 = dma.done [#allocation4], 16
    $region21: #{tpu_custom_call.1} parent=1 // pred_fallthru
      _
    %1907 = sfence
    %1908 = vsyncpa [#allocation3], 1
    %1909 = vsyncpa [#allocation4], 1

</llo_original>
